<compile_context>
chip_gen: v6e
topology: v6e:2x2x1
jax: 0.10.0
libtpu: 0.0.40
codegen_flags: <defaults>
</compile_context>

<pallas_src>
import functools

import jax
import jax.numpy as jnp
from jax import lax
from jax.experimental import pallas as pl
from jax.experimental.pallas import tpu as pltpu


def _conv_bn_relu_kernel(x_ref, w_ref, scale_ref, bias_ref, o_ref, *,
                         kh, kw, oh, ow, sh, sw, taps_per_chunk):
    # x_ref:     (Nb, Hp, Wp, Cin_p)      bf16  zero-padded NHWC images
    # w_ref:     (KH*KW*Cin_p, Cout_p)    bf16  tap-major K ordering
    # scale_ref: (1, Cout_p)              f32   gamma / sqrt(var + eps)
    # bias_ref:  (1, Cout_p)              f32   beta - mean * scale
    # o_ref:     (Nb, OH*OW, Cout_p)      f32
    nb, _, _, cin_p = x_ref.shape
    cout_p = w_ref.shape[-1]
    m = nb * oh * ow

    xv = x_ref[...]                                    # read the block once
    taps = [(ih, iw) for ih in range(kh) for iw in range(kw)]

    acc = jnp.zeros((m, cout_p), jnp.float32)
    # Build A once per K-chunk (concat window slices along the channel axis)
    # and issue one MXU contraction per chunk instead of one tiny dot per tap.
    for c0 in range(0, len(taps), taps_per_chunk):
        chunk = taps[c0:c0 + taps_per_chunk]
        parts = []
        for (ih, iw) in chunk:
            # TODO(synk): stride>1 window slicing is untested on Mosaic (only
            #             stride=1 is exercised here); validate other strides
            #             in interpret mode before relying on them.
            win = xv[:, ih:ih + sh * (oh - 1) + 1:sh,
                        iw:iw + sw * (ow - 1) + 1:sw, :]   # (Nb, OH, OW, Cin_p)
            parts.append(win.reshape(m, cin_p))
        a = parts[0] if len(parts) == 1 else jnp.concatenate(parts, axis=-1)
        wk = w_ref[c0 * cin_p:(c0 + len(chunk)) * cin_p, :]
        acc = acc + jnp.dot(a, wk, preferred_element_type=jnp.float32)

    # Eval-mode BN (f32 scale/bias in the epilogue) + ReLU, lane-dense store.
    y = jnp.maximum(acc * scale_ref[...] + bias_ref[...], 0.0)
    o_ref[...] = y.reshape(nb, oh * ow, cout_p).astype(o_ref.dtype)


def _pair(v):
    if isinstance(v, (tuple, list)):
        a, b = v
        return int(a), int(b)
    return int(v), int(v)


def _round_up(x, m):
    return (x + m - 1) // m * m


def conv2d_bn_relu(x_nchw, weight, gamma, beta, running_mean, running_var, *,
                   stride=1, padding=0, eps=1e-3, batch_block=None):
    """Fused Conv2d(bias=False) + BatchNorm2d(eval) + ReLU.

    x_nchw: (N, Cin, H, W) float32
    weight: (Cout, Cin, KH, KW) float32
    returns: (N, Cout, OH, OW) float32
    """
    n, cin, h, w = x_nchw.shape
    cout, _, kh, kw = weight.shape
    sh, sw = _pair(stride)
    ph, pw = _pair(padding)

    oh = (h + 2 * ph - kh) // sh + 1
    ow = (w + 2 * pw - kw) // sw + 1
    hp, wp = h + 2 * ph, w + 2 * pw

    cin_p = _round_up(cin, 8)          # sublane-friendly contraction dim
    cout_p = _round_up(cout, 128)      # lane-dense MXU result / stores
    k = kh * kw * cin_p

    # Images per grid step: fold batch into matmul M, but keep >=2 grid steps
    # so both v7x TensorCores stay busy.
    if batch_block is None:
        batch_block = n // 2 if (n >= 4 and n % 2 == 0) else 1
    if n % batch_block != 0:
        batch_block = 1
    nb = batch_block
    grid_n = n // nb

    # NCHW -> NHWC, spatial zero-pad, channel pad, bf16 cast (single producer
    # copy under jit; no HBM im2col).
    x = jnp.transpose(x_nchw, (0, 2, 3, 1))                       # (N, H, W, Cin)
    x = jnp.pad(x, ((0, 0), (ph, ph), (pw, pw), (0, cin_p - cin)))
    x = x.astype(jnp.bfloat16)                                    # (N, Hp, Wp, Cin_p)

    # Weights: (Cout,Cin,KH,KW) -> (KH*KW*Cin_p, Cout_p), tap-major K ordering
    # matching the in-kernel concat order; bf16 for the MXU.  BN scale is NOT
    # folded in (applied in f32 in the kernel epilogue).
    wf = jnp.transpose(weight, (2, 3, 1, 0))                      # (KH,KW,Cin,Cout)
    wf = jnp.pad(wf, ((0, 0), (0, 0), (0, cin_p - cin), (0, cout_p - cout)))
    wf = wf.reshape(k, cout_p).astype(jnp.bfloat16)

    scale = (gamma / jnp.sqrt(running_var + eps)).astype(jnp.float32)
    bias = (beta - running_mean * scale).astype(jnp.float32)
    scale_p = jnp.pad(scale, (0, cout_p - cout)).reshape(1, cout_p)
    bias_p = jnp.pad(bias, (0, cout_p - cout)).reshape(1, cout_p)

    # K chunking: <=256 per MXU weight pass (v6e/v7x depth; v5e prefers 128
    # but 256 just splits into two internal passes).
    taps_per_chunk = max(1, 256 // cin_p)

    kernel = functools.partial(_conv_bn_relu_kernel, kh=kh, kw=kw, oh=oh,
                               ow=ow, sh=sh, sw=sw,
                               taps_per_chunk=taps_per_chunk)

    # VMEM budget derived from actual block bytes (v7x has only 64 MiB).
    in_blk = nb * hp * wp * cin_p * 2                 # bf16, double-buffered
    out_blk = nb * oh * ow * cout_p * 4               # f32, double-buffered
    w_res = k * cout_p * 2 + 2 * cout_p * 4           # resident weights + scale/bias
    a_scr = nb * oh * ow * min(k, taps_per_chunk * cin_p) * 2
    acc_scr = nb * oh * ow * cout_p * 4
    vmem_bytes = 2 * in_blk + 2 * out_blk + w_res + a_scr + acc_scr + (8 << 20)
    vmem_bytes = int(min(max(vmem_bytes, 16 << 20), 48 << 20))

    out = pl.pallas_call(
        kernel,
        out_shape=jax.ShapeDtypeStruct((n, oh * ow, cout_p), jnp.float32),
        grid_spec=pltpu.PrefetchScalarGridSpec(
            num_scalar_prefetch=0,
            grid=(grid_n,),
            in_specs=[
                # Nb padded images per grid step (auto double-buffered).
                pl.BlockSpec((nb, hp, wp, cin_p), lambda i: (i, 0, 0, 0)),
                # Weights / BN params are grid-invariant -> resident in VMEM.
                pl.BlockSpec((k, cout_p), lambda i: (0, 0)),
                pl.BlockSpec((1, cout_p), lambda i: (0, 0)),
                pl.BlockSpec((1, cout_p), lambda i: (0, 0)),
            ],
            out_specs=pl.BlockSpec((nb, oh * ow, cout_p), lambda i: (i, 0, 0)),
        ),
        compiler_params=pltpu.CompilerParams(
            dimension_semantics=("parallel",),        # shard batch over TCs
            vmem_limit_bytes=vmem_bytes),
    )(x, wf, scale_p, bias_p)

    out = out.reshape(n, oh, ow, cout_p)[:, :, :, :cout]
    # Module semantics are NCHW; drop this transpose if the consumer takes NHWC.
    return jnp.transpose(out, (0, 3, 1, 2))                       # (N, Cout, OH, OW)


if __name__ == "__main__":
    key = jax.random.PRNGKey(0)
    k_x, k_w, k_g, k_b, k_m, k_v = jax.random.split(key, 6)

    # Module config: Conv2d(in=4, out=8, kernel_size=3, padding=1, stride=1,
    #                       bn=True, act=True)  -> BatchNorm2d(eps=0.001)
    N, CIN, H, W = 2, 4, 16, 16
    COUT, KH, KW = 8, 3, 3
    STRIDE, PADDING, EPS = 1, 1, 1e-3

    x = jax.random.normal(k_x, (N, CIN, H, W), dtype=jnp.float32)
    weight = jax.random.normal(k_w, (COUT, CIN, KH, KW), dtype=jnp.float32) * 0.1
    gamma = 1.0 + 0.1 * jax.random.normal(k_g, (COUT,), dtype=jnp.float32)
    beta = 0.1 * jax.random.normal(k_b, (COUT,), dtype=jnp.float32)
    running_mean = 0.05 * jax.random.normal(k_m, (COUT,), dtype=jnp.float32)
    running_var = 1.0 + 0.1 * jnp.abs(
        jax.random.normal(k_v, (COUT,), dtype=jnp.float32))

    fn = jax.jit(functools.partial(
        conv2d_bn_relu, stride=STRIDE, padding=PADDING, eps=EPS))
    out = fn(x, weight, gamma, beta, running_mean, running_var)
    jax.block_until_ready(out)

    # Reference: f32 conv + eval-mode BN + ReLU via XLA (tolerance for the
    # bf16 activation/weight cast used inside the kernel).
    conv = lax.conv_general_dilated(
        x, weight, window_strides=(STRIDE, STRIDE),
        padding=[(PADDING, PADDING), (PADDING, PADDING)],
        dimension_numbers=("NCHW", "OIHW", "NCHW"),
        precision=lax.Precision.HIGHEST)
    s = gamma / jnp.sqrt(running_var + EPS)
    ref = jnp.maximum(conv * s[None, :, None, None]
                      + (beta - running_mean * s)[None, :, None, None], 0.0)

    assert out.shape == (N, COUT, H, W), out.shape
    assert bool(jnp.all(out >= 0.0))                 # ReLU applied
    max_err = float(jnp.max(jnp.abs(out - ref)))
    assert max_err < 5e-2, max_err
    print("KERNEL_OK")
</pallas_src>

<mosaic_0001>
module attributes {stable_mosaic.version = 11 : i64} {
  func.func @_conv_bn_relu_kernel(%arg0: i32, %arg1: memref<1x18x18x8xbf16, #tpu.memory_space<vmem>>, %arg2: memref<72x128xbf16, #tpu.memory_space<vmem>>, %arg3: memref<1x128xf32, #tpu.memory_space<vmem>>, %arg4: memref<1x128xf32, #tpu.memory_space<vmem>>, %arg5: memref<1x256x128xf32, #tpu.memory_space<vmem>>) attributes {dimension_semantics = [#tpu.dimension_semantics<parallel>], iteration_bounds = array<i64: 2>, scalar_prefetch = 0 : i64, scratch_operands = 0 : i64, tpu.core_type = #tpu.core_type<tc>, window_params = [{transform_indices = @transform_0, window_bounds = array<i64: 1, 18, 18, 8>}, {pipeline_mode = #tpu.pipeline_mode<synchronous>, transform_indices = @transform_1, window_bounds = array<i64: 72, 128>}, {pipeline_mode = #tpu.pipeline_mode<synchronous>, transform_indices = @transform_2, window_bounds = array<i64: 1, 128>}, {pipeline_mode = #tpu.pipeline_mode<synchronous>, transform_indices = @transform_3, window_bounds = array<i64: 1, 128>}, {transform_indices = @transform_4, window_bounds = array<i64: 1, 256, 128>}]} {
    %c0 = arith.constant 0 : index
    %c0_0 = arith.constant 0 : index
    %c0_1 = arith.constant 0 : index
    %c0_2 = arith.constant 0 : index
    %0 = vector.load %arg1[%c0, %c0_0, %c0_1, %c0_2] : memref<1x18x18x8xbf16, #tpu.memory_space<vmem>>, vector<1x18x18x8xbf16>
    %cst = arith.constant 0.000000e+00 : f32
    %1 = vector.broadcast %cst : f32 to vector<256x128xf32>
    %2 = vector.extract_strided_slice %0 {offsets = [0, 0, 0, 0], sizes = [1, 16, 16, 8], strides = [1, 1, 1, 1]} : vector<1x18x18x8xbf16> to vector<1x16x16x8xbf16>
    %3 = vector.shape_cast %2 : vector<1x16x16x8xbf16> to vector<256x8xbf16>
    %4 = vector.extract_strided_slice %0 {offsets = [0, 0, 1, 0], sizes = [1, 16, 16, 8], strides = [1, 1, 1, 1]} : vector<1x18x18x8xbf16> to vector<1x16x16x8xbf16>
    %5 = vector.shape_cast %4 : vector<1x16x16x8xbf16> to vector<256x8xbf16>
    %6 = vector.extract_strided_slice %0 {offsets = [0, 0, 2, 0], sizes = [1, 16, 16, 8], strides = [1, 1, 1, 1]} : vector<1x18x18x8xbf16> to vector<1x16x16x8xbf16>
    %7 = vector.shape_cast %6 : vector<1x16x16x8xbf16> to vector<256x8xbf16>
    %8 = vector.extract_strided_slice %0 {offsets = [0, 1, 0, 0], sizes = [1, 16, 16, 8], strides = [1, 1, 1, 1]} : vector<1x18x18x8xbf16> to vector<1x16x16x8xbf16>
    %9 = vector.shape_cast %8 : vector<1x16x16x8xbf16> to vector<256x8xbf16>
    %10 = vector.extract_strided_slice %0 {offsets = [0, 1, 1, 0], sizes = [1, 16, 16, 8], strides = [1, 1, 1, 1]} : vector<1x18x18x8xbf16> to vector<1x16x16x8xbf16>
    %11 = vector.shape_cast %10 : vector<1x16x16x8xbf16> to vector<256x8xbf16>
    %12 = vector.extract_strided_slice %0 {offsets = [0, 1, 2, 0], sizes = [1, 16, 16, 8], strides = [1, 1, 1, 1]} : vector<1x18x18x8xbf16> to vector<1x16x16x8xbf16>
    %13 = vector.shape_cast %12 : vector<1x16x16x8xbf16> to vector<256x8xbf16>
    %14 = vector.extract_strided_slice %0 {offsets = [0, 2, 0, 0], sizes = [1, 16, 16, 8], strides = [1, 1, 1, 1]} : vector<1x18x18x8xbf16> to vector<1x16x16x8xbf16>
    %15 = vector.shape_cast %14 : vector<1x16x16x8xbf16> to vector<256x8xbf16>
    %16 = vector.extract_strided_slice %0 {offsets = [0, 2, 1, 0], sizes = [1, 16, 16, 8], strides = [1, 1, 1, 1]} : vector<1x18x18x8xbf16> to vector<1x16x16x8xbf16>
    %17 = vector.shape_cast %16 : vector<1x16x16x8xbf16> to vector<256x8xbf16>
    %18 = vector.extract_strided_slice %0 {offsets = [0, 2, 2, 0], sizes = [1, 16, 16, 8], strides = [1, 1, 1, 1]} : vector<1x18x18x8xbf16> to vector<1x16x16x8xbf16>
    %19 = vector.shape_cast %18 : vector<1x16x16x8xbf16> to vector<256x8xbf16>
    %20 = tpu.concatenate %3, %5, %7, %9, %11, %13, %15, %17, %19 in 1 : vector<256x8xbf16>, vector<256x8xbf16>, vector<256x8xbf16>, vector<256x8xbf16>, vector<256x8xbf16>, vector<256x8xbf16>, vector<256x8xbf16>, vector<256x8xbf16>, vector<256x8xbf16> -> vector<256x72xbf16>
    %c0_3 = arith.constant 0 : index
    %c0_4 = arith.constant 0 : index
    %21 = vector.load %arg2[%c0_3, %c0_4] : memref<72x128xbf16, #tpu.memory_space<vmem>>, vector<72x128xbf16>
    %cst_5 = arith.constant dense<0.000000e+00> : vector<256x128xf32>
    %22 = tpu.matmul %20, %21, %cst_5 {dimension_numbers = #tpu.dot_dimension_numbers<[1], [0], [0], [1], [0, 0, 1, 1], [], []>} : vector<256x72xbf16>, vector<72x128xbf16>, vector<256x128xf32> -> vector<256x128xf32>
    %23 = arith.addf %1, %22 : vector<256x128xf32>
    %c0_6 = arith.constant 0 : index
    %c0_7 = arith.constant 0 : index
    %24 = vector.load %arg3[%c0_6, %c0_7] : memref<1x128xf32, #tpu.memory_space<vmem>>, vector<1x128xf32>
    %25 = vector.broadcast %24 : vector<1x128xf32> to vector<256x128xf32>
    %26 = arith.mulf %23, %25 : vector<256x128xf32>
    %c0_8 = arith.constant 0 : index
    %c0_9 = arith.constant 0 : index
    %27 = vector.load %arg4[%c0_8, %c0_9] : memref<1x128xf32, #tpu.memory_space<vmem>>, vector<1x128xf32>
    %28 = vector.broadcast %27 : vector<1x128xf32> to vector<256x128xf32>
    %29 = arith.addf %26, %28 : vector<256x128xf32>
    %cst_10 = arith.constant 0.000000e+00 : f32
    %30 = vector.broadcast %cst_10 : f32 to vector<256x128xf32>
    %31 = arith.maximumf %29, %30 : vector<256x128xf32>
    %32 = vector.shape_cast %31 : vector<256x128xf32> to vector<1x256x128xf32>
    %c0_11 = arith.constant 0 : index
    %c0_12 = arith.constant 0 : index
    %c0_13 = arith.constant 0 : index
    %33 = vector.load %arg5[%c0_11, %c0_12, %c0_13] : memref<1x256x128xf32, #tpu.memory_space<vmem>>, vector<1x256x128xf32>
    tpu.vector_store %arg5[%c0_11, %c0_12, %c0_13], %32 {strides = array<i32>} : memref<1x256x128xf32, #tpu.memory_space<vmem>>, vector<1x256x128xf32>,
    return
  }
  func.func @transform_0(%arg0: i32) -> (i32, i32, i32, i32) {
    %c0_i32 = arith.constant 0 : i32
    %c0_i32_0 = arith.constant 0 : i32
    %c0_i32_1 = arith.constant 0 : i32
    %c0_i32_2 = arith.constant 0 : i32
    return %arg0, %c0_i32, %c0_i32_0, %c0_i32_1 : i32, i32, i32, i32
  }
  func.func @transform_1(%arg0: i32) -> (i32, i32) {
    %c0_i32 = arith.constant 0 : i32
    %c0_i32_0 = arith.constant 0 : i32
    %c0_i32_1 = arith.constant 0 : i32
    return %c0_i32, %c0_i32_0 : i32, i32
  }
  func.func @transform_2(%arg0: i32) -> (i32, i32) {
    %c0_i32 = arith.constant 0 : i32
    %c0_i32_0 = arith.constant 0 : i32
    %c0_i32_1 = arith.constant 0 : i32
    return %c0_i32, %c0_i32_0 : i32, i32
  }
  func.func @transform_3(%arg0: i32) -> (i32, i32) {
    %c0_i32 = arith.constant 0 : i32
    %c0_i32_0 = arith.constant 0 : i32
    %c0_i32_1 = arith.constant 0 : i32
    return %c0_i32, %c0_i32_0 : i32, i32
  }
  func.func @transform_4(%arg0: i32) -> (i32, i32, i32) {
    %c0_i32 = arith.constant 0 : i32
    %c0_i32_0 = arith.constant 0 : i32
    %c0_i32_1 = arith.constant 0 : i32
    return %arg0, %c0_i32, %c0_i32_0 : i32, i32, i32
  }
}

</mosaic_0001>

<llo_original>
// kernel: conv2d_bn_relu.1
$region0: #{conv2d_bn_relu.1}
  #allocation0 [shape = 'u32[]', space=smem, size = 0x4, offset = 0x4, fixed_abs, tag = 'smem constant byte address 0x4 - core index']
  #allocation1 [shape = 'u32[144,128]{1,0:T(1,128)}', space=vmem, size = 0x12000, scoped, tag = 'internal scratch']
  %s0 = inlined_call_operand.vmem [shape: bf16[2,18,18,8], index: 0, kind: input, shape index: {}]
  %s1 = inlined_call_operand.vmem [shape: bf16[72,128], index: 1, kind: input, shape index: {}]
  %s2 = inlined_call_operand.vmem [shape: f32[1,128], index: 2, kind: input, shape index: {}]
  %s3 = inlined_call_operand.vmem [shape: f32[1,128], index: 3, kind: input, shape index: {}]
  %s4 = inlined_call_operand.vmem [shape: f32[2,256,128], index: 4, kind: output, shape index: {}]
  %s5 = sld [smem:[#allocation0]]
  $region49: #{conv2d_bn_relu.1} parent=0
    _
  %s7 = ssub.s32 1, %s5
  %s8 = scalar_select 0, %s7, %s5
  loop: start=0, step=1, limit=4
  $region2: #{conv2d_bn_relu.1} parent=0 // loop_pre_header
    _
  $region3: #{conv2d_bn_relu.1} parent=0 // loop_header
    %s10 = sphi 0, %s14
    %p11 = scmp.ge.s32.totalorder %s10, 4
    %s20 = sphi 0, %s22
    %s23 = sphi 0, %s20
    %s24 = sphi 0, %s23
    %s40 = sphi 0, %s24
    %s44 = sphi 0, %s44
    %s46 = sphi 0, %s44
    %s47 = sphi 0, %s46
    %s61 = sphi 0, %s47
    %s65 = sphi 0, %s65
    %s67 = sphi 0, %s65
    %s68 = sphi 0, %s67
    %s82 = sphi 0, %s68
    %s86 = sphi 0, %s86
    %s88 = sphi 0, %s86
    %s89 = sphi 0, %s88
    %s103 = sphi 0, %s89
    %s109 = sphi 0, %s111
    %s112 = sphi 0, %s109
    %s113 = sphi 0, %s112
    %s129 = sphi 0, %s113
  $region4: #{conv2d_bn_relu.1} parent=0 // loop_header_branch
    %13 = sbr.rel (%p11) target = $region8
  $region5: #{conv2d_bn_relu.1} parent=0 // loop_body
    %s15 = ssub.s32 %s10, 1
    %s16 = ssub.s32 %s10, 2
    %s17 = sadd.s32 %s10, 1
    %s18 = ssub.s32 %s10, %s17
    %p19 = scmp.eq.s32.totalorder %s18, 0
    %s21 = sadd.s32 %s20, 1
    %s22 = scalar_select %p19, %s20, %s21
    %p25 = pneg %p19
    %p26 = scmp.eq.s32.totalorder %s10, 1
    %p27 = por %p25, %p26
    %p28 = scmp.ne.s32.totalorder %s20, %s23
    %p29 = scmp.eq.s32.totalorder %s10, 0
    %p30 = por %p28, %p29
    %p31 = scmp.ne.s32.totalorder %s20, %s23
    %p32 = scmp.eq.s32.totalorder %s15, 1
    %p33 = por %p31, %p32
    %p34 = scmp.ne.s32.totalorder %s23, %s24
    %p35 = scmp.eq.s32.totalorder %s15, 0
    %p36 = por %p34, %p35
    %p37 = scmp.ne.s32.totalorder %s23, %s24
    %p38 = scmp.eq.s32.totalorder %s16, 1
    %p39 = por %p37, %p38
    %p41 = scmp.ne.s32.totalorder %s24, %s40
    %p42 = scmp.eq.s32.totalorder %s16, 0
    %p43 = por %p41, %p42
    %s45 = sadd.s32 %s44, 1
    %p48 = scmp.eq.s32.totalorder %s10, 1
    %p49 = scmp.ne.s32.totalorder %s44, %s46
    %p50 = scmp.eq.s32.totalorder %s10, 0
    %p51 = por %p49, %p50
    %p52 = scmp.ne.s32.totalorder %s44, %s46
    %p53 = scmp.eq.s32.totalorder %s15, 1
    %p54 = por %p52, %p53
    %p55 = scmp.ne.s32.totalorder %s46, %s47
    %p56 = scmp.eq.s32.totalorder %s15, 0
    %p57 = por %p55, %p56
    %p58 = scmp.ne.s32.totalorder %s46, %s47
    %p59 = scmp.eq.s32.totalorder %s16, 1
    %p60 = por %p58, %p59
    %p62 = scmp.ne.s32.totalorder %s47, %s61
    %p63 = scmp.eq.s32.totalorder %s16, 0
    %p64 = por %p62, %p63
    %s66 = sadd.s32 %s65, 1
    %p69 = scmp.eq.s32.totalorder %s10, 1
    %p70 = scmp.ne.s32.totalorder %s65, %s67
    %p71 = scmp.eq.s32.totalorder %s10, 0
    %p72 = por %p70, %p71
    %p73 = scmp.ne.s32.totalorder %s65, %s67
    %p74 = scmp.eq.s32.totalorder %s15, 1
    %p75 = por %p73, %p74
    %p76 = scmp.ne.s32.totalorder %s67, %s68
    %p77 = scmp.eq.s32.totalorder %s15, 0
    %p78 = por %p76, %p77
    %p79 = scmp.ne.s32.totalorder %s67, %s68
    %p80 = scmp.eq.s32.totalorder %s16, 1
    %p81 = por %p79, %p80
    %p83 = scmp.ne.s32.totalorder %s68, %s82
    %p84 = scmp.eq.s32.totalorder %s16, 0
    %p85 = por %p83, %p84
    %s87 = sadd.s32 %s86, 1
    %p90 = scmp.eq.s32.totalorder %s10, 1
    %p91 = scmp.ne.s32.totalorder %s86, %s88
    %p92 = scmp.eq.s32.totalorder %s10, 0
    %p93 = por %p91, %p92
    %p94 = scmp.ne.s32.totalorder %s86, %s88
    %p95 = scmp.eq.s32.totalorder %s15, 1
    %p96 = por %p94, %p95
    %p97 = scmp.ne.s32.totalorder %s88, %s89
    %p98 = scmp.eq.s32.totalorder %s15, 0
    %p99 = por %p97, %p98
    %p100 = scmp.ne.s32.totalorder %s88, %s89
    %p101 = scmp.eq.s32.totalorder %s16, 1
    %p102 = por %p100, %p101
    %p104 = scmp.ne.s32.totalorder %s89, %s103
    %p105 = scmp.eq.s32.totalorder %s16, 0
    %p106 = por %p104, %p105
    %s107 = ssub.s32 %s10, %s17
    %p108 = scmp.eq.s32.totalorder %s107, 0
    %s110 = sadd.s32 %s109, 1
    %s111 = scalar_select %p108, %s109, %s110
    %p114 = pneg %p108
    %p115 = scmp.eq.s32.totalorder %s10, 1
    %p116 = por %p114, %p115
    %p117 = scmp.ne.s32.totalorder %s109, %s112
    %p118 = scmp.eq.s32.totalorder %s10, 0
    %p119 = por %p117, %p118
    %p120 = scmp.ne.s32.totalorder %s109, %s112
    %p121 = scmp.eq.s32.totalorder %s15, 1
    %p122 = por %p120, %p121
    %p123 = scmp.ne.s32.totalorder %s112, %s113
    %p124 = scmp.eq.s32.totalorder %s15, 0
    %p125 = por %p123, %p124
    %p126 = scmp.ne.s32.totalorder %s112, %s113
    %p127 = scmp.eq.s32.totalorder %s16, 1
    %p128 = por %p126, %p127
    %p130 = scmp.ne.s32.totalorder %s113, %s129
    %p131 = scmp.eq.s32.totalorder %s16, 0
    %p132 = por %p130, %p131
    %p133 = scmp.le.s32.totalorder 1, %s10
    %p134 = scmp.lt.s32.totalorder %s10, 3
    %p135 = pnand %p133, %p134
    %p136 = pneg %p135
    // Predicated region
    $region9: #{conv2d_bn_relu.1} parent=5 // pred_check
      _
    $region10: #{conv2d_bn_relu.1} parent=5 // pred_check_branch
      %138 = sbr.rel (%p135) target = $region12
    $region11: #{conv2d_bn_relu.1} parent=5 // pred_region
      %s139 = ssub.s32 %s10, 1
      // Predicated region
      $region13: #{conv2d_bn_relu.1} parent=11 // pred_check
        %p140 = pneg %p57
      $region14: #{conv2d_bn_relu.1} parent=11 // pred_check_branch
        %142 = sbr.rel (%p140) target = $region16
      $region15: #{conv2d_bn_relu.1} parent=11 // pred_region
        _
      $region16: #{conv2d_bn_relu.1} parent=11 // pred_fallthru
        _
      // Predicated region
      $region17: #{conv2d_bn_relu.1} parent=11 // pred_check
        %p143 = pneg %p78
      $region18: #{conv2d_bn_relu.1} parent=11 // pred_check_branch
        %145 = sbr.rel (%p143) target = $region20
      $region19: #{conv2d_bn_relu.1} parent=11 // pred_region
        _
      $region20: #{conv2d_bn_relu.1} parent=11 // pred_fallthru
        _
      // Predicated region
      $region21: #{conv2d_bn_relu.1} parent=11 // pred_check
        %p146 = pneg %p99
      $region22: #{conv2d_bn_relu.1} parent=11 // pred_check_branch
        %148 = sbr.rel (%p146) target = $region24
      $region23: #{conv2d_bn_relu.1} parent=11 // pred_region
        _
      $region24: #{conv2d_bn_relu.1} parent=11 // pred_fallthru
        _
    $region12: #{conv2d_bn_relu.1} parent=5 // pred_fallthru
      _
    %p149 = scmp.lt.s32.totalorder %s10, 2
    // Predicated region
    $region25: #{conv2d_bn_relu.1} parent=5 // pred_check
      %p150 = pneg %p149
    $region26: #{conv2d_bn_relu.1} parent=5 // pred_check_branch
      %152 = sbr.rel (%p150) target = $region28
    $region27: #{conv2d_bn_relu.1} parent=5 // pred_region
      // Predicated region
      $region29: #{conv2d_bn_relu.1} parent=27 // pred_check
        %p153 = pneg %p30
      $region30: #{conv2d_bn_relu.1} parent=27 // pred_check_branch
        %155 = sbr.rel (%p153) target = $region32
      $region31: #{conv2d_bn_relu.1} parent=27 // pred_region
        %p156 = scmp.lt.s32.totalorder %s10, 1
        %s157 = scalar_select %p156, %s10, 1
        %s158 = smul.addr %s157, 54
        %s159 = smul.addr %s158, 4
        %s160 = scalar_lea.vmem %s0, %s159
      $region32: #{conv2d_bn_relu.1} parent=27 // pred_fallthru
        _
    $region28: #{conv2d_bn_relu.1} parent=5 // pred_fallthru
      _
    %p161 = scmp.le.s32.totalorder 1, %s10
    %p162 = scmp.lt.s32.totalorder %s10, 3
    %p163 = pnand %p161, %p162
    %p164 = pneg %p163
    // Predicated region
    $region33: #{conv2d_bn_relu.1} parent=5 // pred_check
      _
    $region34: #{conv2d_bn_relu.1} parent=5 // pred_check_branch
      %166 = sbr.rel (%p163) target = $region36
    $region35: #{conv2d_bn_relu.1} parent=5 // pred_region
      %s167 = ssub.s32 %s10, 1
      %p168 = scmp.lt.s32.totalorder %s15, 1
      %s169 = scalar_select %p168, %s15, 1
      %s170 = smul.addr %s169, 54
      %s171 = smul.addr %s170, 4
      %s172 = scalar_lea.vmem %s0, %s171
      %p173 = pneg %p36
      %p174 = pneg %p33
      %p175 = pneg %p57
      %p176 = pneg %p54
      %p177 = pneg %p78
      %p178 = pneg %p75
      %p179 = pneg %p99
      %p180 = pneg %p96
      %p181 = pneg %p125
      %p182 = pneg %p122
      %p183 = scmp.lt.s32.totalorder %s15, 1
      %s184 = scalar_select %p183, %s15, 1
      %s185 = smul.addr %s184, 32
      %s186 = smul.addr %s185, 8
      %s187 = scalar_lea.vmem %s4, %s186
      %p188 = scmp.lt.s32.totalorder %s15, 1
      %s189 = scalar_select %p188, %s15, 1
      %s190 = smul.addr %s189, 54
      %s191 = smul.addr %s190, 4
      %s192 = scalar_lea.vmem %s0, %s191
      %p193 = scmp.lt.s32.totalorder %s15, 1
      %s194 = scalar_select %p193, %s15, 1
      %s195 = smul.addr %s194, 32
      %s196 = smul.addr %s195, 8
      %s197 = scalar_lea.vmem %s4, %s196
      %v199 = vld [vmem:[%s192] sm:$0xf]
      %v200 = vld [vmem:[%s192 + $0x4] sm:$0xf]
      %v201 = vld [vmem:[%s192 + $0x8] sm:$0x1]
      %v202 = vld [vmem:[%s192 + $0xc] sm:$0xf]
      %v203 = vld [vmem:[%s192 + $0x10] sm:$0xf]
      %v204 = vld [vmem:[%s192 + $0x14] sm:$0x1]
      %v205 = vld [vmem:[%s192 + $0x18] sm:$0xf]
      %v206 = vld [vmem:[%s192 + $0x1c] sm:$0xf]
      %v207 = vld [vmem:[%s192 + $0x20] sm:$0x1]
      %v208 = vld [vmem:[%s192 + $0x24] sm:$0xf]
      %v209 = vld [vmem:[%s192 + $0x28] sm:$0xf]
      %v210 = vld [vmem:[%s192 + $0x2c] sm:$0x1]
      %v211 = vld [vmem:[%s192 + $0x30] sm:$0xf]
      %v212 = vld [vmem:[%s192 + $0x34] sm:$0xf]
      %v213 = vld [vmem:[%s192 + $0x38] sm:$0x1]
      %v214 = vld [vmem:[%s192 + $0x3c] sm:$0xf]
      %v215 = vld [vmem:[%s192 + $0x40] sm:$0xf]
      %v216 = vld [vmem:[%s192 + $0x44] sm:$0x1]
      %v217 = vld [vmem:[%s192 + $0x48] sm:$0xf]
      %v218 = vld [vmem:[%s192 + $0x4c] sm:$0xf]
      %v219 = vld [vmem:[%s192 + $0x50] sm:$0x1]
      %v220 = vld [vmem:[%s192 + $0x54] sm:$0xf]
      %v221 = vld [vmem:[%s192 + $0x58] sm:$0xf]
      %v222 = vld [vmem:[%s192 + $0x5c] sm:$0x1]
      %v223 = vld [vmem:[%s192 + $0x60] sm:$0xf]
      %v224 = vld [vmem:[%s192 + $0x64] sm:$0xf]
      %v225 = vld [vmem:[%s192 + $0x68] sm:$0x1]
      %v226 = vld [vmem:[%s192 + $0x6c] sm:$0xf]
      %v227 = vld [vmem:[%s192 + $0x70] sm:$0xf]
      %v228 = vld [vmem:[%s192 + $0x74] sm:$0x1]
      %v229 = vld [vmem:[%s192 + $0x78] sm:$0xf]
      %v230 = vld [vmem:[%s192 + $0x7c] sm:$0xf]
      %v231 = vld [vmem:[%s192 + $0x80] sm:$0x1]
      %v232 = vld [vmem:[%s192 + $0x84] sm:$0xf]
      %v233 = vld [vmem:[%s192 + $0x88] sm:$0xf]
      %v234 = vld [vmem:[%s192 + $0x8c] sm:$0x1]
      %v235 = vld [vmem:[%s192 + $0x90] sm:$0xf]
      %v236 = vld [vmem:[%s192 + $0x94] sm:$0xf]
      %v237 = vld [vmem:[%s192 + $0x98] sm:$0x1]
      %v238 = vld [vmem:[%s192 + $0x9c] sm:$0xf]
      %v239 = vld [vmem:[%s192 + $0xa0] sm:$0xf]
      %v240 = vld [vmem:[%s192 + $0xa4] sm:$0x1]
      %v241 = vld [vmem:[%s192 + $0xa8] sm:$0xf]
      %v242 = vld [vmem:[%s192 + $0xac] sm:$0xf]
      %v243 = vld [vmem:[%s192 + $0xb0] sm:$0x1]
      %v244 = vld [vmem:[%s192 + $0xb4] sm:$0xf]
      %v245 = vld [vmem:[%s192 + $0xb8] sm:$0xf]
      %v246 = vld [vmem:[%s192 + $0xbc] sm:$0x1]
      %v247 = vld [vmem:[%s192 + $0xc0] sm:$0xf]
      %v248 = vld [vmem:[%s192 + $0xc4] sm:$0xf]
      %v249 = vld [vmem:[%s192 + $0xc8] sm:$0x1]
      %v250 = vld [vmem:[%s192 + $0xcc] sm:$0xf]
      %v251 = vld [vmem:[%s192 + $0xd0] sm:$0xf]
      %v252 = vld [vmem:[%s192 + $0xd4] sm:$0x1]
      %vm253 = vsmask.f32 3328
      %vm254 = vsmask.f32 7440
      %vm255 = vmor %vm253, %vm254
      %v257 = vshrl.u32 %v199, 16
      %v259 = vrot.slane %v257, 4
      %v260 = vshll.u32 %v199, 16
      %v262 = vrot.slane %v260, 5
      %v263 = vor.u32 %v259, %v262
      %v264 = vrot.slane %v263, 4
      %v266 = vshll.u32 %v200, 16
      %v268 = vrot.slane %v266, 5
      %v269 = vsel %vm255, %v264, %v268
      %v270 = vshrl.u32 %v200, 16
      %v272 = vrot.slane %v270, 4
      %v273 = vor.u32 %v272, %v268
      %v274 = vrot.slane %v273, 4
      %v276 = vshll.u32 %v201, 16
      %v278 = vrot.slane %v276, 5
      %v279 = vsel %vm255, %v274, %v278
      %v281 = vshrl.u32 %v202, 16
      %v283 = vrot.slane %v281, 4
      %v284 = vshll.u32 %v202, 16
      %v286 = vrot.slane %v284, 5
      %v287 = vor.u32 %v283, %v286
      %v288 = vrot.slane %v287, 4
      %v290 = vshll.u32 %v203, 16
      %v292 = vrot.slane %v290, 5
      %v293 = vsel %vm255, %v288, %v292
      %v294 = vshrl.u32 %v203, 16
      %v296 = vrot.slane %v294, 4
      %v297 = vor.u32 %v296, %v292
      %v298 = vrot.slane %v297, 4
      %v300 = vshll.u32 %v204, 16
      %v302 = vrot.slane %v300, 5
      %v303 = vsel %vm255, %v298, %v302
      %v305 = vshrl.u32 %v205, 16
      %v307 = vrot.slane %v305, 4
      %v308 = vshll.u32 %v205, 16
      %v310 = vrot.slane %v308, 5
      %v311 = vor.u32 %v307, %v310
      %v312 = vrot.slane %v311, 4
      %v314 = vshll.u32 %v206, 16
      %v316 = vrot.slane %v314, 5
      %v317 = vsel %vm255, %v312, %v316
      %v318 = vshrl.u32 %v206, 16
      %v320 = vrot.slane %v318, 4
      %v321 = vor.u32 %v320, %v316
      %v322 = vrot.slane %v321, 4
      %v324 = vshll.u32 %v207, 16
      %v326 = vrot.slane %v324, 5
      %v327 = vsel %vm255, %v322, %v326
      %v329 = vshrl.u32 %v208, 16
      %v331 = vrot.slane %v329, 4
      %v332 = vshll.u32 %v208, 16
      %v334 = vrot.slane %v332, 5
      %v335 = vor.u32 %v331, %v334
      %v336 = vrot.slane %v335, 4
      %v338 = vshll.u32 %v209, 16
      %v340 = vrot.slane %v338, 5
      %v341 = vsel %vm255, %v336, %v340
      %v342 = vshrl.u32 %v209, 16
      %v344 = vrot.slane %v342, 4
      %v345 = vor.u32 %v344, %v340
      %v346 = vrot.slane %v345, 4
      %v348 = vshll.u32 %v210, 16
      %v350 = vrot.slane %v348, 5
      %v351 = vsel %vm255, %v346, %v350
      %v353 = vshrl.u32 %v211, 16
      %v355 = vrot.slane %v353, 4
      %v356 = vshll.u32 %v211, 16
      %v358 = vrot.slane %v356, 5
      %v359 = vor.u32 %v355, %v358
      %v360 = vrot.slane %v359, 4
      %v362 = vshll.u32 %v212, 16
      %v364 = vrot.slane %v362, 5
      %v365 = vsel %vm255, %v360, %v364
      %v366 = vshrl.u32 %v212, 16
      %v368 = vrot.slane %v366, 4
      %v369 = vor.u32 %v368, %v364
      %v370 = vrot.slane %v369, 4
      %v372 = vshll.u32 %v213, 16
      %v374 = vrot.slane %v372, 5
      %v375 = vsel %vm255, %v370, %v374
      %v377 = vshrl.u32 %v214, 16
      %v379 = vrot.slane %v377, 4
      %v380 = vshll.u32 %v214, 16
      %v382 = vrot.slane %v380, 5
      %v383 = vor.u32 %v379, %v382
      %v384 = vrot.slane %v383, 4
      %v386 = vshll.u32 %v215, 16
      %v388 = vrot.slane %v386, 5
      %v389 = vsel %vm255, %v384, %v388
      %v390 = vshrl.u32 %v215, 16
      %v392 = vrot.slane %v390, 4
      %v393 = vor.u32 %v392, %v388
      %v394 = vrot.slane %v393, 4
      %v396 = vshll.u32 %v216, 16
      %v398 = vrot.slane %v396, 5
      %v399 = vsel %vm255, %v394, %v398
      %v401 = vshrl.u32 %v217, 16
      %v403 = vrot.slane %v401, 4
      %v404 = vshll.u32 %v217, 16
      %v406 = vrot.slane %v404, 5
      %v407 = vor.u32 %v403, %v406
      %v408 = vrot.slane %v407, 4
      %v410 = vshll.u32 %v218, 16
      %v412 = vrot.slane %v410, 5
      %v413 = vsel %vm255, %v408, %v412
      %v414 = vshrl.u32 %v218, 16
      %v416 = vrot.slane %v414, 4
      %v417 = vor.u32 %v416, %v412
      %v418 = vrot.slane %v417, 4
      %v420 = vshll.u32 %v219, 16
      %v422 = vrot.slane %v420, 5
      %v423 = vsel %vm255, %v418, %v422
      %v425 = vshrl.u32 %v220, 16
      %v427 = vrot.slane %v425, 4
      %v428 = vshll.u32 %v220, 16
      %v430 = vrot.slane %v428, 5
      %v431 = vor.u32 %v427, %v430
      %v432 = vrot.slane %v431, 4
      %v434 = vshll.u32 %v221, 16
      %v436 = vrot.slane %v434, 5
      %v437 = vsel %vm255, %v432, %v436
      %v438 = vshrl.u32 %v221, 16
      %v440 = vrot.slane %v438, 4
      %v441 = vor.u32 %v440, %v436
      %v442 = vrot.slane %v441, 4
      %v444 = vshll.u32 %v222, 16
      %v446 = vrot.slane %v444, 5
      %v447 = vsel %vm255, %v442, %v446
      %v449 = vshrl.u32 %v223, 16
      %v451 = vrot.slane %v449, 4
      %v452 = vshll.u32 %v223, 16
      %v454 = vrot.slane %v452, 5
      %v455 = vor.u32 %v451, %v454
      %v456 = vrot.slane %v455, 4
      %v458 = vshll.u32 %v224, 16
      %v460 = vrot.slane %v458, 5
      %v461 = vsel %vm255, %v456, %v460
      %v462 = vshrl.u32 %v224, 16
      %v464 = vrot.slane %v462, 4
      %v465 = vor.u32 %v464, %v460
      %v466 = vrot.slane %v465, 4
      %v468 = vshll.u32 %v225, 16
      %v470 = vrot.slane %v468, 5
      %v471 = vsel %vm255, %v466, %v470
      %v473 = vshrl.u32 %v226, 16
      %v475 = vrot.slane %v473, 4
      %v476 = vshll.u32 %v226, 16
      %v478 = vrot.slane %v476, 5
      %v479 = vor.u32 %v475, %v478
      %v480 = vrot.slane %v479, 4
      %v482 = vshll.u32 %v227, 16
      %v484 = vrot.slane %v482, 5
      %v485 = vsel %vm255, %v480, %v484
      %v486 = vshrl.u32 %v227, 16
      %v488 = vrot.slane %v486, 4
      %v489 = vor.u32 %v488, %v484
      %v490 = vrot.slane %v489, 4
      %v492 = vshll.u32 %v228, 16
      %v494 = vrot.slane %v492, 5
      %v495 = vsel %vm255, %v490, %v494
      %v497 = vshrl.u32 %v229, 16
      %v499 = vrot.slane %v497, 4
      %v500 = vshll.u32 %v229, 16
      %v502 = vrot.slane %v500, 5
      %v503 = vor.u32 %v499, %v502
      %v504 = vrot.slane %v503, 4
      %v506 = vshll.u32 %v230, 16
      %v508 = vrot.slane %v506, 5
      %v509 = vsel %vm255, %v504, %v508
      %v510 = vshrl.u32 %v230, 16
      %v512 = vrot.slane %v510, 4
      %v513 = vor.u32 %v512, %v508
      %v514 = vrot.slane %v513, 4
      %v516 = vshll.u32 %v231, 16
      %v518 = vrot.slane %v516, 5
      %v519 = vsel %vm255, %v514, %v518
      %v521 = vshrl.u32 %v232, 16
      %v523 = vrot.slane %v521, 4
      %v524 = vshll.u32 %v232, 16
      %v526 = vrot.slane %v524, 5
      %v527 = vor.u32 %v523, %v526
      %v528 = vrot.slane %v527, 4
      %v530 = vshll.u32 %v233, 16
      %v532 = vrot.slane %v530, 5
      %v533 = vsel %vm255, %v528, %v532
      %v534 = vshrl.u32 %v233, 16
      %v536 = vrot.slane %v534, 4
      %v537 = vor.u32 %v536, %v532
      %v538 = vrot.slane %v537, 4
      %v540 = vshll.u32 %v234, 16
      %v542 = vrot.slane %v540, 5
      %v543 = vsel %vm255, %v538, %v542
      %v545 = vshrl.u32 %v235, 16
      %v547 = vrot.slane %v545, 4
      %v548 = vshll.u32 %v235, 16
      %v550 = vrot.slane %v548, 5
      %v551 = vor.u32 %v547, %v550
      %v552 = vrot.slane %v551, 4
      %v554 = vshll.u32 %v236, 16
      %v556 = vrot.slane %v554, 5
      %v557 = vsel %vm255, %v552, %v556
      %v558 = vshrl.u32 %v236, 16
      %v560 = vrot.slane %v558, 4
      %v561 = vor.u32 %v560, %v556
      %v562 = vrot.slane %v561, 4
      %v564 = vshll.u32 %v237, 16
      %v566 = vrot.slane %v564, 5
      %v567 = vsel %vm255, %v562, %v566
      %v569 = vshrl.u32 %v238, 16
      %v571 = vrot.slane %v569, 4
      %v572 = vshll.u32 %v238, 16
      %v574 = vrot.slane %v572, 5
      %v575 = vor.u32 %v571, %v574
      %v576 = vrot.slane %v575, 4
      %v578 = vshll.u32 %v239, 16
      %v580 = vrot.slane %v578, 5
      %v581 = vsel %vm255, %v576, %v580
      %v582 = vshrl.u32 %v239, 16
      %v584 = vrot.slane %v582, 4
      %v585 = vor.u32 %v584, %v580
      %v586 = vrot.slane %v585, 4
      %v588 = vshll.u32 %v240, 16
      %v590 = vrot.slane %v588, 5
      %v591 = vsel %vm255, %v586, %v590
      %v593 = vshrl.u32 %v241, 16
      %v595 = vrot.slane %v593, 4
      %v596 = vshll.u32 %v241, 16
      %v598 = vrot.slane %v596, 5
      %v599 = vor.u32 %v595, %v598
      %v600 = vrot.slane %v599, 4
      %v602 = vshll.u32 %v242, 16
      %v604 = vrot.slane %v602, 5
      %v605 = vsel %vm255, %v600, %v604
      %v606 = vshrl.u32 %v242, 16
      %v608 = vrot.slane %v606, 4
      %v609 = vor.u32 %v608, %v604
      %v610 = vrot.slane %v609, 4
      %v612 = vshll.u32 %v243, 16
      %v614 = vrot.slane %v612, 5
      %v615 = vsel %vm255, %v610, %v614
      %v617 = vshrl.u32 %v244, 16
      %v619 = vrot.slane %v617, 4
      %v620 = vshll.u32 %v244, 16
      %v622 = vrot.slane %v620, 5
      %v623 = vor.u32 %v619, %v622
      %v624 = vrot.slane %v623, 4
      %v626 = vshll.u32 %v245, 16
      %v628 = vrot.slane %v626, 5
      %v629 = vsel %vm255, %v624, %v628
      %v630 = vshrl.u32 %v245, 16
      %v632 = vrot.slane %v630, 4
      %v633 = vor.u32 %v632, %v628
      %v634 = vrot.slane %v633, 4
      %v636 = vshll.u32 %v246, 16
      %v638 = vrot.slane %v636, 5
      %v639 = vsel %vm255, %v634, %v638
      %vm688 = vcmask 1042432
      %vm689 = vcmask 1046532
      %vm690 = vmor %vm688, %vm689
      %v691 = vrot.slane %v199, 5
      %v692 = vrot.slane %v691, 4
      %v693 = vrot.slane %v200, 5
      %v694 = vsel %vm690, %v692, %v693
      %v695 = vrot.slane %v693, 4
      %v696 = vrot.slane %v201, 5
      %v697 = vsel %vm690, %v695, %v696
      %v698 = vrot.slane %v202, 5
      %v699 = vrot.slane %v698, 4
      %v700 = vrot.slane %v203, 5
      %v701 = vsel %vm690, %v699, %v700
      %v702 = vrot.slane %v700, 4
      %v703 = vrot.slane %v204, 5
      %v704 = vsel %vm690, %v702, %v703
      %v705 = vrot.slane %v205, 5
      %v706 = vrot.slane %v705, 4
      %v707 = vrot.slane %v206, 5
      %v708 = vsel %vm690, %v706, %v707
      %v709 = vrot.slane %v707, 4
      %v710 = vrot.slane %v207, 5
      %v711 = vsel %vm690, %v709, %v710
      %v712 = vrot.slane %v208, 5
      %v713 = vrot.slane %v712, 4
      %v714 = vrot.slane %v209, 5
      %v715 = vsel %vm690, %v713, %v714
      %v716 = vrot.slane %v714, 4
      %v717 = vrot.slane %v210, 5
      %v718 = vsel %vm690, %v716, %v717
      %v719 = vrot.slane %v211, 5
      %v720 = vrot.slane %v719, 4
      %v721 = vrot.slane %v212, 5
      %v722 = vsel %vm690, %v720, %v721
      %v723 = vrot.slane %v721, 4
      %v724 = vrot.slane %v213, 5
      %v725 = vsel %vm690, %v723, %v724
      %v726 = vrot.slane %v214, 5
      %v727 = vrot.slane %v726, 4
      %v728 = vrot.slane %v215, 5
      %v729 = vsel %vm690, %v727, %v728
      %v730 = vrot.slane %v728, 4
      %v731 = vrot.slane %v216, 5
      %v732 = vsel %vm690, %v730, %v731
      %v733 = vrot.slane %v217, 5
      %v734 = vrot.slane %v733, 4
      %v735 = vrot.slane %v218, 5
      %v736 = vsel %vm690, %v734, %v735
      %v737 = vrot.slane %v735, 4
      %v738 = vrot.slane %v219, 5
      %v739 = vsel %vm690, %v737, %v738
      %v740 = vrot.slane %v220, 5
      %v741 = vrot.slane %v740, 4
      %v742 = vrot.slane %v221, 5
      %v743 = vsel %vm690, %v741, %v742
      %v744 = vrot.slane %v742, 4
      %v745 = vrot.slane %v222, 5
      %v746 = vsel %vm690, %v744, %v745
      %v747 = vrot.slane %v223, 5
      %v748 = vrot.slane %v747, 4
      %v749 = vrot.slane %v224, 5
      %v750 = vsel %vm690, %v748, %v749
      %v751 = vrot.slane %v749, 4
      %v752 = vrot.slane %v225, 5
      %v753 = vsel %vm690, %v751, %v752
      %v754 = vrot.slane %v226, 5
      %v755 = vrot.slane %v754, 4
      %v756 = vrot.slane %v227, 5
      %v757 = vsel %vm690, %v755, %v756
      %v758 = vrot.slane %v756, 4
      %v759 = vrot.slane %v228, 5
      %v760 = vsel %vm690, %v758, %v759
      %v761 = vrot.slane %v229, 5
      %v762 = vrot.slane %v761, 4
      %v763 = vrot.slane %v230, 5
      %v764 = vsel %vm690, %v762, %v763
      %v765 = vrot.slane %v763, 4
      %v766 = vrot.slane %v231, 5
      %v767 = vsel %vm690, %v765, %v766
      %v768 = vrot.slane %v232, 5
      %v769 = vrot.slane %v768, 4
      %v770 = vrot.slane %v233, 5
      %v771 = vsel %vm690, %v769, %v770
      %v772 = vrot.slane %v770, 4
      %v773 = vrot.slane %v234, 5
      %v774 = vsel %vm690, %v772, %v773
      %v775 = vrot.slane %v235, 5
      %v776 = vrot.slane %v775, 4
      %v777 = vrot.slane %v236, 5
      %v778 = vsel %vm690, %v776, %v777
      %v779 = vrot.slane %v777, 4
      %v780 = vrot.slane %v237, 5
      %v781 = vsel %vm690, %v779, %v780
      %v782 = vrot.slane %v238, 5
      %v783 = vrot.slane %v782, 4
      %v784 = vrot.slane %v239, 5
      %v785 = vsel %vm690, %v783, %v784
      %v786 = vrot.slane %v784, 4
      %v787 = vrot.slane %v240, 5
      %v788 = vsel %vm690, %v786, %v787
      %v789 = vrot.slane %v241, 5
      %v790 = vrot.slane %v789, 4
      %v791 = vrot.slane %v242, 5
      %v792 = vsel %vm690, %v790, %v791
      %v793 = vrot.slane %v791, 4
      %v794 = vrot.slane %v243, 5
      %v795 = vsel %vm690, %v793, %v794
      %v796 = vrot.slane %v244, 5
      %v797 = vrot.slane %v796, 4
      %v798 = vrot.slane %v245, 5
      %v799 = vsel %vm690, %v797, %v798
      %v800 = vrot.slane %v798, 4
      %v801 = vrot.slane %v246, 5
      %v802 = vsel %vm690, %v800, %v801
      %v804 = vshrl.u32 %v247, 16
      %v806 = vrot.slane %v804, 4
      %v807 = vshll.u32 %v247, 16
      %v809 = vrot.slane %v807, 5
      %v810 = vor.u32 %v806, %v809
      %v811 = vrot.slane %v810, 4
      %v813 = vshll.u32 %v248, 16
      %v815 = vrot.slane %v813, 5
      %v816 = vsel %vm255, %v811, %v815
      %v817 = vshrl.u32 %v248, 16
      %v819 = vrot.slane %v817, 4
      %v820 = vor.u32 %v819, %v815
      %v821 = vrot.slane %v820, 4
      %v823 = vshll.u32 %v249, 16
      %v825 = vrot.slane %v823, 5
      %v826 = vsel %vm255, %v821, %v825
      %v830 = vrot.slane %v247, 5
      %v831 = vrot.slane %v830, 4
      %v832 = vrot.slane %v248, 5
      %v833 = vsel %vm690, %v831, %v832
      %v834 = vrot.slane %v832, 4
      %v835 = vrot.slane %v249, 5
      %v836 = vsel %vm690, %v834, %v835
      %v838 = vshrl.u32 %v250, 16
      %v840 = vrot.slane %v838, 4
      %v841 = vshll.u32 %v250, 16
      %v843 = vrot.slane %v841, 5
      %v844 = vor.u32 %v840, %v843
      %v845 = vrot.slane %v844, 4
      %v847 = vshll.u32 %v251, 16
      %v849 = vrot.slane %v847, 5
      %v850 = vsel %vm255, %v845, %v849
      %v851 = vshrl.u32 %v251, 16
      %v853 = vrot.slane %v851, 4
      %v854 = vor.u32 %v853, %v849
      %v855 = vrot.slane %v854, 4
      %v857 = vshll.u32 %v252, 16
      %v859 = vrot.slane %v857, 5
      %v860 = vsel %vm255, %v855, %v859
      %v864 = vrot.slane %v250, 5
      %v865 = vrot.slane %v864, 4
      %v866 = vrot.slane %v251, 5
      %v867 = vsel %vm690, %v865, %v866
      %v868 = vrot.slane %v866, 4
      %v869 = vrot.slane %v252, 5
      %v870 = vsel %vm690, %v868, %v869
      %v871 = vunpack.c.l.b16 %v199
      %v872 = vunpack.c.l.b16 %v200
      %v873 = vunpack.c.l.b16 %v202
      %v874 = vunpack.c.l.b16 %v203
      %v875 = vunpack.c.l.b16 %v205
      %v876 = vunpack.c.l.b16 %v206
      %v877 = vunpack.c.l.b16 %v208
      %v878 = vunpack.c.l.b16 %v209
      %v879 = vunpack.c.l.b16 %v211
      %v880 = vunpack.c.l.b16 %v212
      %v881 = vunpack.c.l.b16 %v214
      %v882 = vunpack.c.l.b16 %v215
      %v883 = vunpack.c.l.b16 %v217
      %v884 = vunpack.c.l.b16 %v218
      %v885 = vunpack.c.l.b16 %v220
      %v886 = vunpack.c.l.b16 %v221
      %v887 = vunpack.c.l.b16 %v223
      %v888 = vunpack.c.l.b16 %v224
      %v889 = vunpack.c.l.b16 %v226
      %v890 = vunpack.c.l.b16 %v227
      %v891 = vunpack.c.l.b16 %v229
      %v892 = vunpack.c.l.b16 %v230
      %v893 = vunpack.c.l.b16 %v232
      %v894 = vunpack.c.l.b16 %v233
      %v895 = vunpack.c.l.b16 %v235
      %v896 = vunpack.c.l.b16 %v236
      %v897 = vunpack.c.l.b16 %v238
      %v898 = vunpack.c.l.b16 %v239
      %v899 = vunpack.c.l.b16 %v241
      %v900 = vunpack.c.l.b16 %v242
      %v901 = vunpack.c.l.b16 %v244
      %v902 = vunpack.c.l.b16 %v245
      %v903 = vpack.c.b16 %v872, %v871
      %v904 = vpack.c.b16 %v874, %v873
      %v905 = vpack.c.b16 %v876, %v875
      %v906 = vpack.c.b16 %v878, %v877
      %v907 = vpack.c.b16 %v880, %v879
      %v908 = vpack.c.b16 %v882, %v881
      %v909 = vpack.c.b16 %v884, %v883
      %v910 = vpack.c.b16 %v886, %v885
      %v911 = vpack.c.b16 %v888, %v887
      %v912 = vpack.c.b16 %v890, %v889
      %v913 = vpack.c.b16 %v892, %v891
      %v914 = vpack.c.b16 %v894, %v893
      %v915 = vpack.c.b16 %v896, %v895
      %v916 = vpack.c.b16 %v898, %v897
      %v917 = vpack.c.b16 %v900, %v899
      %v918 = vpack.c.b16 %v902, %v901
      %v919 = vunpack.c.l.b16 %v269
      %v920 = vunpack.c.l.b16 %v279
      %v921 = vunpack.c.l.b16 %v293
      %v922 = vunpack.c.l.b16 %v303
      %v923 = vunpack.c.l.b16 %v317
      %v924 = vunpack.c.l.b16 %v327
      %v925 = vunpack.c.l.b16 %v341
      %v926 = vunpack.c.l.b16 %v351
      %v927 = vunpack.c.l.b16 %v365
      %v928 = vunpack.c.l.b16 %v375
      %v929 = vunpack.c.l.b16 %v389
      %v930 = vunpack.c.l.b16 %v399
      %v931 = vunpack.c.l.b16 %v413
      %v932 = vunpack.c.l.b16 %v423
      %v933 = vunpack.c.l.b16 %v437
      %v934 = vunpack.c.l.b16 %v447
      %v935 = vunpack.c.l.b16 %v461
      %v936 = vunpack.c.l.b16 %v471
      %v937 = vunpack.c.l.b16 %v485
      %v938 = vunpack.c.l.b16 %v495
      %v939 = vunpack.c.l.b16 %v509
      %v940 = vunpack.c.l.b16 %v519
      %v941 = vunpack.c.l.b16 %v533
      %v942 = vunpack.c.l.b16 %v543
      %v943 = vunpack.c.l.b16 %v557
      %v944 = vunpack.c.l.b16 %v567
      %v945 = vunpack.c.l.b16 %v581
      %v946 = vunpack.c.l.b16 %v591
      %v947 = vunpack.c.l.b16 %v605
      %v948 = vunpack.c.l.b16 %v615
      %v949 = vunpack.c.l.b16 %v629
      %v950 = vunpack.c.l.b16 %v639
      %v951 = vpack.c.b16 %v920, %v919
      %v952 = vpack.c.b16 %v922, %v921
      %v953 = vpack.c.b16 %v924, %v923
      %v954 = vpack.c.b16 %v926, %v925
      %v955 = vpack.c.b16 %v928, %v927
      %v956 = vpack.c.b16 %v930, %v929
      %v957 = vpack.c.b16 %v932, %v931
      %v958 = vpack.c.b16 %v934, %v933
      %v959 = vpack.c.b16 %v936, %v935
      %v960 = vpack.c.b16 %v938, %v937
      %v961 = vpack.c.b16 %v940, %v939
      %v962 = vpack.c.b16 %v942, %v941
      %v963 = vpack.c.b16 %v944, %v943
      %v964 = vpack.c.b16 %v946, %v945
      %v965 = vpack.c.b16 %v948, %v947
      %v966 = vpack.c.b16 %v950, %v949
      %967 = vrot.lane.b32.xlu0 %v951, 8
      %v968 = vpop.permute.xlu0 %967
      %969 = vrot.lane.b32.xlu0 %v952, 8
      %v970 = vpop.permute.xlu0 %969
      %971 = vrot.lane.b32.xlu0 %v953, 8
      %v972 = vpop.permute.xlu0 %971
      %973 = vrot.lane.b32.xlu0 %v954, 8
      %v974 = vpop.permute.xlu0 %973
      %975 = vrot.lane.b32.xlu0 %v955, 8
      %v976 = vpop.permute.xlu0 %975
      %977 = vrot.lane.b32.xlu0 %v956, 8
      %v978 = vpop.permute.xlu0 %977
      %979 = vrot.lane.b32.xlu0 %v957, 8
      %v980 = vpop.permute.xlu0 %979
      %981 = vrot.lane.b32.xlu0 %v958, 8
      %v982 = vpop.permute.xlu0 %981
      %983 = vrot.lane.b32.xlu0 %v959, 8
      %v984 = vpop.permute.xlu0 %983
      %985 = vrot.lane.b32.xlu0 %v960, 8
      %v986 = vpop.permute.xlu0 %985
      %987 = vrot.lane.b32.xlu0 %v961, 8
      %v988 = vpop.permute.xlu0 %987
      %989 = vrot.lane.b32.xlu0 %v962, 8
      %v990 = vpop.permute.xlu0 %989
      %991 = vrot.lane.b32.xlu0 %v963, 8
      %v992 = vpop.permute.xlu0 %991
      %993 = vrot.lane.b32.xlu0 %v964, 8
      %v994 = vpop.permute.xlu0 %993
      %995 = vrot.lane.b32.xlu0 %v965, 8
      %v996 = vpop.permute.xlu0 %995
      %997 = vrot.lane.b32.xlu0 %v966, 8
      %v998 = vpop.permute.xlu0 %997
      %v999 = vunpack.c.l.b16 %v694
      %v1000 = vunpack.c.l.b16 %v697
      %v1001 = vunpack.c.l.b16 %v701
      %v1002 = vunpack.c.l.b16 %v704
      %v1003 = vunpack.c.l.b16 %v708
      %v1004 = vunpack.c.l.b16 %v711
      %v1005 = vunpack.c.l.b16 %v715
      %v1006 = vunpack.c.l.b16 %v718
      %v1007 = vunpack.c.l.b16 %v722
      %v1008 = vunpack.c.l.b16 %v725
      %v1009 = vunpack.c.l.b16 %v729
      %v1010 = vunpack.c.l.b16 %v732
      %v1011 = vunpack.c.l.b16 %v736
      %v1012 = vunpack.c.l.b16 %v739
      %v1013 = vunpack.c.l.b16 %v743
      %v1014 = vunpack.c.l.b16 %v746
      %v1015 = vunpack.c.l.b16 %v750
      %v1016 = vunpack.c.l.b16 %v753
      %v1017 = vunpack.c.l.b16 %v757
      %v1018 = vunpack.c.l.b16 %v760
      %v1019 = vunpack.c.l.b16 %v764
      %v1020 = vunpack.c.l.b16 %v767
      %v1021 = vunpack.c.l.b16 %v771
      %v1022 = vunpack.c.l.b16 %v774
      %v1023 = vunpack.c.l.b16 %v778
      %v1024 = vunpack.c.l.b16 %v781
      %v1025 = vunpack.c.l.b16 %v785
      %v1026 = vunpack.c.l.b16 %v788
      %v1027 = vunpack.c.l.b16 %v792
      %v1028 = vunpack.c.l.b16 %v795
      %v1029 = vunpack.c.l.b16 %v799
      %v1030 = vunpack.c.l.b16 %v802
      %v1031 = vpack.c.b16 %v1000, %v999
      %v1032 = vpack.c.b16 %v1002, %v1001
      %v1033 = vpack.c.b16 %v1004, %v1003
      %v1034 = vpack.c.b16 %v1006, %v1005
      %v1035 = vpack.c.b16 %v1008, %v1007
      %v1036 = vpack.c.b16 %v1010, %v1009
      %v1037 = vpack.c.b16 %v1012, %v1011
      %v1038 = vpack.c.b16 %v1014, %v1013
      %v1039 = vpack.c.b16 %v1016, %v1015
      %v1040 = vpack.c.b16 %v1018, %v1017
      %v1041 = vpack.c.b16 %v1020, %v1019
      %v1042 = vpack.c.b16 %v1022, %v1021
      %v1043 = vpack.c.b16 %v1024, %v1023
      %v1044 = vpack.c.b16 %v1026, %v1025
      %v1045 = vpack.c.b16 %v1028, %v1027
      %v1046 = vpack.c.b16 %v1030, %v1029
      %1047 = vrot.lane.b32.xlu0 %v1031, 16
      %v1048 = vpop.permute.xlu0 %1047
      %1049 = vrot.lane.b32.xlu0 %v1032, 16
      %v1050 = vpop.permute.xlu0 %1049
      %1051 = vrot.lane.b32.xlu0 %v1033, 16
      %v1052 = vpop.permute.xlu0 %1051
      %1053 = vrot.lane.b32.xlu0 %v1034, 16
      %v1054 = vpop.permute.xlu0 %1053
      %1055 = vrot.lane.b32.xlu0 %v1035, 16
      %v1056 = vpop.permute.xlu0 %1055
      %1057 = vrot.lane.b32.xlu0 %v1036, 16
      %v1058 = vpop.permute.xlu0 %1057
      %1059 = vrot.lane.b32.xlu0 %v1037, 16
      %v1060 = vpop.permute.xlu0 %1059
      %1061 = vrot.lane.b32.xlu0 %v1038, 16
      %v1062 = vpop.permute.xlu0 %1061
      %1063 = vrot.lane.b32.xlu0 %v1039, 16
      %v1064 = vpop.permute.xlu0 %1063
      %1065 = vrot.lane.b32.xlu0 %v1040, 16
      %v1066 = vpop.permute.xlu0 %1065
      %1067 = vrot.lane.b32.xlu0 %v1041, 16
      %v1068 = vpop.permute.xlu0 %1067
      %1069 = vrot.lane.b32.xlu0 %v1042, 16
      %v1070 = vpop.permute.xlu0 %1069
      %1071 = vrot.lane.b32.xlu0 %v1043, 16
      %v1072 = vpop.permute.xlu0 %1071
      %1073 = vrot.lane.b32.xlu0 %v1044, 16
      %v1074 = vpop.permute.xlu0 %1073
      %1075 = vrot.lane.b32.xlu0 %v1045, 16
      %v1076 = vpop.permute.xlu0 %1075
      %1077 = vrot.lane.b32.xlu0 %v1046, 16
      %v1078 = vpop.permute.xlu0 %1077
      %v1079 = vunpack.c.l.b16 %v247
      %v1080 = vunpack.c.l.b16 %v248
      %v1081 = vpack.c.b16 %v1080, %v1079
      %1082 = vrot.lane.b32.xlu0 %v904, 24
      %v1083 = vpop.permute.xlu0 %1082
      %1084 = vrot.lane.b32.xlu0 %v905, 24
      %v1085 = vpop.permute.xlu0 %1084
      %1086 = vrot.lane.b32.xlu0 %v906, 24
      %v1087 = vpop.permute.xlu0 %1086
      %1088 = vrot.lane.b32.xlu0 %v907, 24
      %v1089 = vpop.permute.xlu0 %1088
      %1090 = vrot.lane.b32.xlu0 %v908, 24
      %v1091 = vpop.permute.xlu0 %1090
      %1092 = vrot.lane.b32.xlu0 %v909, 24
      %v1093 = vpop.permute.xlu0 %1092
      %1094 = vrot.lane.b32.xlu0 %v910, 24
      %v1095 = vpop.permute.xlu0 %1094
      %1096 = vrot.lane.b32.xlu0 %v911, 24
      %v1097 = vpop.permute.xlu0 %1096
      %1098 = vrot.lane.b32.xlu0 %v912, 24
      %v1099 = vpop.permute.xlu0 %1098
      %1100 = vrot.lane.b32.xlu0 %v913, 24
      %v1101 = vpop.permute.xlu0 %1100
      %1102 = vrot.lane.b32.xlu0 %v914, 24
      %v1103 = vpop.permute.xlu0 %1102
      %1104 = vrot.lane.b32.xlu0 %v915, 24
      %v1105 = vpop.permute.xlu0 %1104
      %1106 = vrot.lane.b32.xlu0 %v916, 24
      %v1107 = vpop.permute.xlu0 %1106
      %1108 = vrot.lane.b32.xlu0 %v917, 24
      %v1109 = vpop.permute.xlu0 %1108
      %1110 = vrot.lane.b32.xlu0 %v918, 24
      %v1111 = vpop.permute.xlu0 %1110
      %1112 = vrot.lane.b32.xlu0 %v1081, 24
      %v1113 = vpop.permute.xlu0 %1112
      %v1114 = vunpack.c.l.b16 %v816
      %v1115 = vunpack.c.l.b16 %v826
      %v1116 = vpack.c.b16 %v1115, %v1114
      %1117 = vrot.lane.b32.xlu0 %v952, 32
      %v1118 = vpop.permute.xlu0 %1117
      %1119 = vrot.lane.b32.xlu0 %v953, 32
      %v1120 = vpop.permute.xlu0 %1119
      %1121 = vrot.lane.b32.xlu0 %v954, 32
      %v1122 = vpop.permute.xlu0 %1121
      %1123 = vrot.lane.b32.xlu0 %v955, 32
      %v1124 = vpop.permute.xlu0 %1123
      %1125 = vrot.lane.b32.xlu0 %v956, 32
      %v1126 = vpop.permute.xlu0 %1125
      %1127 = vrot.lane.b32.xlu0 %v957, 32
      %v1128 = vpop.permute.xlu0 %1127
      %1129 = vrot.lane.b32.xlu0 %v958, 32
      %v1130 = vpop.permute.xlu0 %1129
      %1131 = vrot.lane.b32.xlu0 %v959, 32
      %v1132 = vpop.permute.xlu0 %1131
      %1133 = vrot.lane.b32.xlu0 %v960, 32
      %v1134 = vpop.permute.xlu0 %1133
      %1135 = vrot.lane.b32.xlu0 %v961, 32
      %v1136 = vpop.permute.xlu0 %1135
      %1137 = vrot.lane.b32.xlu0 %v962, 32
      %v1138 = vpop.permute.xlu0 %1137
      %1139 = vrot.lane.b32.xlu0 %v963, 32
      %v1140 = vpop.permute.xlu0 %1139
      %1141 = vrot.lane.b32.xlu0 %v964, 32
      %v1142 = vpop.permute.xlu0 %1141
      %1143 = vrot.lane.b32.xlu0 %v965, 32
      %v1144 = vpop.permute.xlu0 %1143
      %1145 = vrot.lane.b32.xlu0 %v966, 32
      %v1146 = vpop.permute.xlu0 %1145
      %1147 = vrot.lane.b32.xlu0 %v1116, 32
      %v1148 = vpop.permute.xlu0 %1147
      %v1149 = vunpack.c.l.b16 %v833
      %v1150 = vunpack.c.l.b16 %v836
      %v1151 = vpack.c.b16 %v1150, %v1149
      %1152 = vrot.lane.b32.xlu0 %v1032, 40
      %v1153 = vpop.permute.xlu0 %1152
      %1154 = vrot.lane.b32.xlu0 %v1033, 40
      %v1155 = vpop.permute.xlu0 %1154
      %1156 = vrot.lane.b32.xlu0 %v1034, 40
      %v1157 = vpop.permute.xlu0 %1156
      %1158 = vrot.lane.b32.xlu0 %v1035, 40
      %v1159 = vpop.permute.xlu0 %1158
      %1160 = vrot.lane.b32.xlu0 %v1036, 40
      %v1161 = vpop.permute.xlu0 %1160
      %1162 = vrot.lane.b32.xlu0 %v1037, 40
      %v1163 = vpop.permute.xlu0 %1162
      %1164 = vrot.lane.b32.xlu0 %v1038, 40
      %v1165 = vpop.permute.xlu0 %1164
      %1166 = vrot.lane.b32.xlu0 %v1039, 40
      %v1167 = vpop.permute.xlu0 %1166
      %1168 = vrot.lane.b32.xlu0 %v1040, 40
      %v1169 = vpop.permute.xlu0 %1168
      %1170 = vrot.lane.b32.xlu0 %v1041, 40
      %v1171 = vpop.permute.xlu0 %1170
      %1172 = vrot.lane.b32.xlu0 %v1042, 40
      %v1173 = vpop.permute.xlu0 %1172
      %1174 = vrot.lane.b32.xlu0 %v1043, 40
      %v1175 = vpop.permute.xlu0 %1174
      %1176 = vrot.lane.b32.xlu0 %v1044, 40
      %v1177 = vpop.permute.xlu0 %1176
      %1178 = vrot.lane.b32.xlu0 %v1045, 40
      %v1179 = vpop.permute.xlu0 %1178
      %1180 = vrot.lane.b32.xlu0 %v1046, 40
      %v1181 = vpop.permute.xlu0 %1180
      %1182 = vrot.lane.b32.xlu0 %v1151, 40
      %v1183 = vpop.permute.xlu0 %1182
      %v1184 = vunpack.c.l.b16 %v250
      %v1185 = vunpack.c.l.b16 %v251
      %v1186 = vpack.c.b16 %v1185, %v1184
      %1187 = vrot.lane.b32.xlu0 %v905, 48
      %v1188 = vpop.permute.xlu0 %1187
      %1189 = vrot.lane.b32.xlu0 %v906, 48
      %v1190 = vpop.permute.xlu0 %1189
      %1191 = vrot.lane.b32.xlu0 %v907, 48
      %v1192 = vpop.permute.xlu0 %1191
      %1193 = vrot.lane.b32.xlu0 %v908, 48
      %v1194 = vpop.permute.xlu0 %1193
      %1195 = vrot.lane.b32.xlu0 %v909, 48
      %v1196 = vpop.permute.xlu0 %1195
      %1197 = vrot.lane.b32.xlu0 %v910, 48
      %v1198 = vpop.permute.xlu0 %1197
      %1199 = vrot.lane.b32.xlu0 %v911, 48
      %v1200 = vpop.permute.xlu0 %1199
      %1201 = vrot.lane.b32.xlu0 %v912, 48
      %v1202 = vpop.permute.xlu0 %1201
      %1203 = vrot.lane.b32.xlu0 %v913, 48
      %v1204 = vpop.permute.xlu0 %1203
      %1205 = vrot.lane.b32.xlu0 %v914, 48
      %v1206 = vpop.permute.xlu0 %1205
      %1207 = vrot.lane.b32.xlu0 %v915, 48
      %v1208 = vpop.permute.xlu0 %1207
      %1209 = vrot.lane.b32.xlu0 %v916, 48
      %v1210 = vpop.permute.xlu0 %1209
      %1211 = vrot.lane.b32.xlu0 %v917, 48
      %v1212 = vpop.permute.xlu0 %1211
      %1213 = vrot.lane.b32.xlu0 %v918, 48
      %v1214 = vpop.permute.xlu0 %1213
      %1215 = vrot.lane.b32.xlu0 %v1081, 48
      %v1216 = vpop.permute.xlu0 %1215
      %1217 = vrot.lane.b32.xlu0 %v1186, 48
      %v1218 = vpop.permute.xlu0 %1217
      %v1219 = vunpack.c.l.b16 %v850
      %v1220 = vunpack.c.l.b16 %v860
      %v1221 = vpack.c.b16 %v1220, %v1219
      %1222 = vrot.lane.b32.xlu0 %v953, 56
      %v1223 = vpop.permute.xlu0 %1222
      %1224 = vrot.lane.b32.xlu0 %v954, 56
      %v1225 = vpop.permute.xlu0 %1224
      %1226 = vrot.lane.b32.xlu0 %v955, 56
      %v1227 = vpop.permute.xlu0 %1226
      %1228 = vrot.lane.b32.xlu0 %v956, 56
      %v1229 = vpop.permute.xlu0 %1228
      %1230 = vrot.lane.b32.xlu0 %v957, 56
      %v1231 = vpop.permute.xlu0 %1230
      %1232 = vrot.lane.b32.xlu0 %v958, 56
      %v1233 = vpop.permute.xlu0 %1232
      %1234 = vrot.lane.b32.xlu0 %v959, 56
      %v1235 = vpop.permute.xlu0 %1234
      %1236 = vrot.lane.b32.xlu0 %v960, 56
      %v1237 = vpop.permute.xlu0 %1236
      %1238 = vrot.lane.b32.xlu0 %v961, 56
      %v1239 = vpop.permute.xlu0 %1238
      %1240 = vrot.lane.b32.xlu0 %v962, 56
      %v1241 = vpop.permute.xlu0 %1240
      %1242 = vrot.lane.b32.xlu0 %v963, 56
      %v1243 = vpop.permute.xlu0 %1242
      %1244 = vrot.lane.b32.xlu0 %v964, 56
      %v1245 = vpop.permute.xlu0 %1244
      %1246 = vrot.lane.b32.xlu0 %v965, 56
      %v1247 = vpop.permute.xlu0 %1246
      %1248 = vrot.lane.b32.xlu0 %v966, 56
      %v1249 = vpop.permute.xlu0 %1248
      %1250 = vrot.lane.b32.xlu0 %v1116, 56
      %v1251 = vpop.permute.xlu0 %1250
      %1252 = vrot.lane.b32.xlu0 %v1221, 56
      %v1253 = vpop.permute.xlu0 %1252
      %v1254 = vunpack.c.l.b16 %v867
      %v1255 = vunpack.c.l.b16 %v870
      %v1256 = vpack.c.b16 %v1255, %v1254
      %1257 = vrot.lane.b32.xlu0 %v1033, 64
      %v1258 = vpop.permute.xlu0 %1257
      %1259 = vrot.lane.b32.xlu0 %v1034, 64
      %v1260 = vpop.permute.xlu0 %1259
      %1261 = vrot.lane.b32.xlu0 %v1035, 64
      %v1262 = vpop.permute.xlu0 %1261
      %1263 = vrot.lane.b32.xlu0 %v1036, 64
      %v1264 = vpop.permute.xlu0 %1263
      %1265 = vrot.lane.b32.xlu0 %v1037, 64
      %v1266 = vpop.permute.xlu0 %1265
      %1267 = vrot.lane.b32.xlu0 %v1038, 64
      %v1268 = vpop.permute.xlu0 %1267
      %1269 = vrot.lane.b32.xlu0 %v1039, 64
      %v1270 = vpop.permute.xlu0 %1269
      %1271 = vrot.lane.b32.xlu0 %v1040, 64
      %v1272 = vpop.permute.xlu0 %1271
      %1273 = vrot.lane.b32.xlu0 %v1041, 64
      %v1274 = vpop.permute.xlu0 %1273
      %1275 = vrot.lane.b32.xlu0 %v1042, 64
      %v1276 = vpop.permute.xlu0 %1275
      %1277 = vrot.lane.b32.xlu0 %v1043, 64
      %v1278 = vpop.permute.xlu0 %1277
      %1279 = vrot.lane.b32.xlu0 %v1044, 64
      %v1280 = vpop.permute.xlu0 %1279
      %1281 = vrot.lane.b32.xlu0 %v1045, 64
      %v1282 = vpop.permute.xlu0 %1281
      %1283 = vrot.lane.b32.xlu0 %v1046, 64
      %v1284 = vpop.permute.xlu0 %1283
      %1285 = vrot.lane.b32.xlu0 %v1151, 64
      %v1286 = vpop.permute.xlu0 %1285
      %1287 = vrot.lane.b32.xlu0 %v1256, 64
      %v1288 = vpop.permute.xlu0 %1287
      %vm1289 = vcmask 64512
      %v1292 = vsel %vm1289, %v903, %v968
      %v1295 = vsel %vm1289, %v904, %v970
      %v1298 = vsel %vm1289, %v905, %v972
      %v1301 = vsel %vm1289, %v906, %v974
      %v1304 = vsel %vm1289, %v907, %v976
      %v1307 = vsel %vm1289, %v908, %v978
      %v1310 = vsel %vm1289, %v909, %v980
      %v1313 = vsel %vm1289, %v910, %v982
      %v1316 = vsel %vm1289, %v911, %v984
      %v1319 = vsel %vm1289, %v912, %v986
      %v1322 = vsel %vm1289, %v913, %v988
      %v1325 = vsel %vm1289, %v914, %v990
      %v1328 = vsel %vm1289, %v915, %v992
      %v1331 = vsel %vm1289, %v916, %v994
      %v1334 = vsel %vm1289, %v917, %v996
      %v1337 = vsel %vm1289, %v918, %v998
      %vm1338 = vcmask 130048
      %v1340 = vsel %vm1338, %v1292, %v1048
      %v1342 = vsel %vm1338, %v1295, %v1050
      %v1344 = vsel %vm1338, %v1298, %v1052
      %v1346 = vsel %vm1338, %v1301, %v1054
      %v1348 = vsel %vm1338, %v1304, %v1056
      %v1350 = vsel %vm1338, %v1307, %v1058
      %v1352 = vsel %vm1338, %v1310, %v1060
      %v1354 = vsel %vm1338, %v1313, %v1062
      %v1356 = vsel %vm1338, %v1316, %v1064
      %v1358 = vsel %vm1338, %v1319, %v1066
      %v1360 = vsel %vm1338, %v1322, %v1068
      %v1362 = vsel %vm1338, %v1325, %v1070
      %v1364 = vsel %vm1338, %v1328, %v1072
      %v1366 = vsel %vm1338, %v1331, %v1074
      %v1368 = vsel %vm1338, %v1334, %v1076
      %v1370 = vsel %vm1338, %v1337, %v1078
      %vm1371 = vcmask 195584
      %v1373 = vsel %vm1371, %v1340, %v1083
      %v1375 = vsel %vm1371, %v1342, %v1085
      %v1377 = vsel %vm1371, %v1344, %v1087
      %v1379 = vsel %vm1371, %v1346, %v1089
      %v1381 = vsel %vm1371, %v1348, %v1091
      %v1383 = vsel %vm1371, %v1350, %v1093
      %v1385 = vsel %vm1371, %v1352, %v1095
      %v1387 = vsel %vm1371, %v1354, %v1097
      %v1389 = vsel %vm1371, %v1356, %v1099
      %v1391 = vsel %vm1371, %v1358, %v1101
      %v1393 = vsel %vm1371, %v1360, %v1103
      %v1395 = vsel %vm1371, %v1362, %v1105
      %v1397 = vsel %vm1371, %v1364, %v1107
      %v1399 = vsel %vm1371, %v1366, %v1109
      %v1401 = vsel %vm1371, %v1368, %v1111
      %v1403 = vsel %vm1371, %v1370, %v1113
      %vm1404 = vcmask 261120
      %v1406 = vsel %vm1404, %v1373, %v1118
      %v1408 = vsel %vm1404, %v1375, %v1120
      %v1410 = vsel %vm1404, %v1377, %v1122
      %v1412 = vsel %vm1404, %v1379, %v1124
      %v1414 = vsel %vm1404, %v1381, %v1126
      %v1416 = vsel %vm1404, %v1383, %v1128
      %v1418 = vsel %vm1404, %v1385, %v1130
      %v1420 = vsel %vm1404, %v1387, %v1132
      %v1422 = vsel %vm1404, %v1389, %v1134
      %v1424 = vsel %vm1404, %v1391, %v1136
      %v1426 = vsel %vm1404, %v1393, %v1138
      %v1428 = vsel %vm1404, %v1395, %v1140
      %v1430 = vsel %vm1404, %v1397, %v1142
      %v1432 = vsel %vm1404, %v1399, %v1144
      %v1434 = vsel %vm1404, %v1401, %v1146
      %v1436 = vsel %vm1404, %v1403, %v1148
      %vm1437 = vcmask 326656
      %v1439 = vsel %vm1437, %v1406, %v1153
      %v1441 = vsel %vm1437, %v1408, %v1155
      %v1443 = vsel %vm1437, %v1410, %v1157
      %v1445 = vsel %vm1437, %v1412, %v1159
      %v1447 = vsel %vm1437, %v1414, %v1161
      %v1449 = vsel %vm1437, %v1416, %v1163
      %v1451 = vsel %vm1437, %v1418, %v1165
      %v1453 = vsel %vm1437, %v1420, %v1167
      %v1455 = vsel %vm1437, %v1422, %v1169
      %v1457 = vsel %vm1437, %v1424, %v1171
      %v1459 = vsel %vm1437, %v1426, %v1173
      %v1461 = vsel %vm1437, %v1428, %v1175
      %v1463 = vsel %vm1437, %v1430, %v1177
      %v1465 = vsel %vm1437, %v1432, %v1179
      %v1467 = vsel %vm1437, %v1434, %v1181
      %v1469 = vsel %vm1437, %v1436, %v1183
      %vm1470 = vcmask 392192
      %v1472 = vsel %vm1470, %v1439, %v1188
      %v1474 = vsel %vm1470, %v1441, %v1190
      %v1476 = vsel %vm1470, %v1443, %v1192
      %v1478 = vsel %vm1470, %v1445, %v1194
      %v1480 = vsel %vm1470, %v1447, %v1196
      %v1482 = vsel %vm1470, %v1449, %v1198
      %v1484 = vsel %vm1470, %v1451, %v1200
      %v1486 = vsel %vm1470, %v1453, %v1202
      %v1488 = vsel %vm1470, %v1455, %v1204
      %v1490 = vsel %vm1470, %v1457, %v1206
      %v1492 = vsel %vm1470, %v1459, %v1208
      %v1494 = vsel %vm1470, %v1461, %v1210
      %v1496 = vsel %vm1470, %v1463, %v1212
      %v1498 = vsel %vm1470, %v1465, %v1214
      %v1500 = vsel %vm1470, %v1467, %v1216
      %v1502 = vsel %vm1470, %v1469, %v1218
      %vm1503 = vcmask 457728
      %v1505 = vsel %vm1503, %v1472, %v1223
      %v1507 = vsel %vm1503, %v1474, %v1225
      %v1509 = vsel %vm1503, %v1476, %v1227
      %v1511 = vsel %vm1503, %v1478, %v1229
      %v1513 = vsel %vm1503, %v1480, %v1231
      %v1515 = vsel %vm1503, %v1482, %v1233
      %v1517 = vsel %vm1503, %v1484, %v1235
      %v1519 = vsel %vm1503, %v1486, %v1237
      %v1521 = vsel %vm1503, %v1488, %v1239
      %v1523 = vsel %vm1503, %v1490, %v1241
      %v1525 = vsel %vm1503, %v1492, %v1243
      %v1527 = vsel %vm1503, %v1494, %v1245
      %v1529 = vsel %vm1503, %v1496, %v1247
      %v1531 = vsel %vm1503, %v1498, %v1249
      %v1533 = vsel %vm1503, %v1500, %v1251
      %v1535 = vsel %vm1503, %v1502, %v1253
      %vm1536 = vcmask 523264
      %v1538 = vsel %vm1536, %v1505, %v1258
      %v1540 = vsel %vm1536, %v1507, %v1260
      %v1542 = vsel %vm1536, %v1509, %v1262
      %v1544 = vsel %vm1536, %v1511, %v1264
      %v1546 = vsel %vm1536, %v1513, %v1266
      %v1548 = vsel %vm1536, %v1515, %v1268
      %v1550 = vsel %vm1536, %v1517, %v1270
      %v1552 = vsel %vm1536, %v1519, %v1272
      %v1554 = vsel %vm1536, %v1521, %v1274
      %v1556 = vsel %vm1536, %v1523, %v1276
      %v1558 = vsel %vm1536, %v1525, %v1278
      %v1560 = vsel %vm1536, %v1527, %v1280
      %v1562 = vsel %vm1536, %v1529, %v1282
      %v1564 = vsel %vm1536, %v1531, %v1284
      %v1566 = vsel %vm1536, %v1533, %v1286
      %v1568 = vsel %vm1536, %v1535, %v1288
      %v1569 = vld [vmem:[%s1] sm:$0xf]
      %v1570 = vld [vmem:[%s1 + $0x4] sm:$0xf]
      %v1571 = vld [vmem:[%s1 + $0x8] sm:$0xf]
      %v1572 = vld [vmem:[%s1 + $0xc] sm:$0xf]
      %v1573 = vld [vmem:[%s1 + $0x10] sm:$0xf]
      %v1574 = vld [vmem:[%s1 + $0x14] sm:$0xf]
      %v1575 = vld [vmem:[%s1 + $0x18] sm:$0xf]
      %v1576 = vld [vmem:[%s1 + $0x1c] sm:$0xf]
      %v1577 = vld [vmem:[%s1 + $0x20] sm:$0xf]
      %v1587 = vunpack.c.l.b16 %v1569
      %v1588 = vunpack.c.l.b16 %v1570
      %v1589 = vunpack.c.l.b16 %v1571
      %v1590 = vunpack.c.l.b16 %v1572
      %v1591 = vunpack.c.l.b16 %v1573
      %v1592 = vunpack.c.l.b16 %v1574
      %v1593 = vunpack.c.l.b16 %v1575
      %v1594 = vunpack.c.l.b16 %v1576
      %v1595 = vunpack.c.l.b16 %v1577
      %v1596 = vpack.c.b16 %v1588, %v1587
      %v1597 = vpack.c.b16 %v1590, %v1589
      %v1598 = vpack.c.b16 %v1592, %v1591
      %v1599 = vpack.c.b16 %v1594, %v1593
      %v1600 = vpack.c.b16 %v1595, %v1595
      %vm1605 = vcmask 588800
      %v1606 = vsel %vm1605, %v1538, 0
      %v1608 = vsel %vm1605, %v1540, 0
      %v1610 = vsel %vm1605, %v1542, 0
      %v1612 = vsel %vm1605, %v1544, 0
      %v1614 = vsel %vm1605, %v1546, 0
      %v1616 = vsel %vm1605, %v1548, 0
      %v1618 = vsel %vm1605, %v1550, 0
      %v1620 = vsel %vm1605, %v1552, 0
      %v1622 = vsel %vm1605, %v1554, 0
      %v1624 = vsel %vm1605, %v1556, 0
      %v1626 = vsel %vm1605, %v1558, 0
      %v1628 = vsel %vm1605, %v1560, 0
      %v1630 = vsel %vm1605, %v1562, 0
      %v1632 = vsel %vm1605, %v1564, 0
      %v1634 = vsel %vm1605, %v1566, 0
      %v1636 = vsel %vm1605, %v1568, 0
      %vm1638 = vcmask 1043456
      %v1640 = vsel %vm1638, %v1600, 0
      %1642 = vmatprep.subr.bf16.mxu0 0
      %1643 = vmatpush1.bf16.msra.mxu0 0
      %1644 = vmatprep.subr.bf16.mxu0 0
      %1645 = vmatpush1.bf16.msra.mxu0 0
      %1646 = vmatprep.subr.bf16.mxu0 0
      %1647 = vmatpush1.bf16.msra.mxu0 0
      %1648 = vmatprep.subr.bf16.mxu0 0
      %1649 = vmatpush1.bf16.msra.mxu0 %v1640
      %1650 = vmatprep.subr.bf16.mxu0 0
      %1651 = vmatpush1.bf16.msra.mxu0 %v1599
      %1652 = vmatprep.subr.bf16.mxu0 0
      %1653 = vmatpush1.bf16.msra.mxu0 %v1598
      %1654 = vmatprep.subr.bf16.mxu0 0
      %1655 = vmatpush1.bf16.msra.mxu0 %v1597
      %1656 = vmatprep.subr.bf16.mxu0 0
      %1657 = vmatpush1.bf16.msra.mxu0 %v1596
      %1658 = vmatprep.subr.bf16.mxu0 0
      %1659 = vmatpush2.bf16.msra.mxu0 0
      %1660 = vmatprep.subr.bf16.mxu0 0
      %1661 = vmatpush2.bf16.msra.mxu0 0
      %1662 = vmatprep.subr.bf16.mxu0 0
      %1663 = vmatpush2.bf16.msra.mxu0 0
      %1664 = vmatprep.subr.bf16.mxu0 0
      %1665 = vmatpush2.bf16.msra.mxu0 0
      %1666 = vmatprep.subr.bf16.mxu0 0
      %1667 = vmatpush2.bf16.msra.mxu0 0
      %1668 = vmatprep.subr.bf16.mxu0 0
      %1669 = vmatpush2.bf16.msra.mxu0 0
      %1670 = vmatprep.subr.bf16.mxu0 0
      %1671 = vmatpush2.bf16.msra.mxu0 0
      %1672 = vmatprep.subr.bf16.mxu0 0
      %1673 = vmatpush2.bf16.msra.mxu0 0
      %1674 = vmatprep.mubr.bf16.mxu0 0
      %1675 = vmatmul.mubr.bf16.gmra.mxu0 %v1606
      %v1676 = vpop.f32.mrf.mxu0
      %v1677 = vadd.f32 0.0, %v1676
      %v1678 = vpop.f32.mrf.mxu0
      %v1679 = vpop.f32.mrf.mxu0
      %v1680 = vadd.f32 0.0, %v1679
      %v1681 = vpop.f32.mrf.mxu0
      %1682 = vmatprep.mubr.bf16.mxu0 0
      %1683 = vmatmul.mubr.bf16.gmra.mxu0 %v1608
      %v1684 = vpop.f32.mrf.mxu0
      %v1685 = vadd.f32 0.0, %v1684
      %v1686 = vpop.f32.mrf.mxu0
      %v1687 = vpop.f32.mrf.mxu0
      %v1688 = vadd.f32 0.0, %v1687
      %v1689 = vpop.f32.mrf.mxu0
      %1690 = vmatprep.mubr.bf16.mxu0 0
      %1691 = vmatmul.mubr.bf16.gmra.mxu0 %v1610
      %v1692 = vpop.f32.mrf.mxu0
      %v1693 = vadd.f32 0.0, %v1692
      %v1694 = vpop.f32.mrf.mxu0
      %v1695 = vpop.f32.mrf.mxu0
      %v1696 = vadd.f32 0.0, %v1695
      %v1697 = vpop.f32.mrf.mxu0
      %1698 = vmatprep.mubr.bf16.mxu0 0
      %1699 = vmatmul.mubr.bf16.gmra.mxu0 %v1612
      %v1700 = vpop.f32.mrf.mxu0
      %v1701 = vadd.f32 0.0, %v1700
      %v1702 = vpop.f32.mrf.mxu0
      %v1703 = vpop.f32.mrf.mxu0
      %v1704 = vadd.f32 0.0, %v1703
      %v1705 = vpop.f32.mrf.mxu0
      %1706 = vmatprep.mubr.bf16.mxu0 0
      %1707 = vmatmul.mubr.bf16.gmra.mxu0 %v1614
      %v1708 = vpop.f32.mrf.mxu0
      %v1709 = vadd.f32 0.0, %v1708
      %v1710 = vpop.f32.mrf.mxu0
      %v1711 = vpop.f32.mrf.mxu0
      %v1712 = vadd.f32 0.0, %v1711
      %v1713 = vpop.f32.mrf.mxu0
      %1714 = vmatprep.mubr.bf16.mxu0 0
      %1715 = vmatmul.mubr.bf16.gmra.mxu0 %v1616
      %v1716 = vpop.f32.mrf.mxu0
      %v1717 = vadd.f32 0.0, %v1716
      %v1718 = vpop.f32.mrf.mxu0
      %v1719 = vpop.f32.mrf.mxu0
      %v1720 = vadd.f32 0.0, %v1719
      %v1721 = vpop.f32.mrf.mxu0
      %1722 = vmatprep.mubr.bf16.mxu0 0
      %1723 = vmatmul.mubr.bf16.gmra.mxu0 %v1618
      %v1724 = vpop.f32.mrf.mxu0
      %v1725 = vadd.f32 0.0, %v1724
      %v1726 = vpop.f32.mrf.mxu0
      %v1727 = vpop.f32.mrf.mxu0
      %v1728 = vadd.f32 0.0, %v1727
      %v1729 = vpop.f32.mrf.mxu0
      %1730 = vmatprep.mubr.bf16.mxu0 0
      %1731 = vmatmul.mubr.bf16.gmra.mxu0 %v1620
      %v1732 = vpop.f32.mrf.mxu0
      %v1733 = vadd.f32 0.0, %v1732
      %v1734 = vpop.f32.mrf.mxu0
      %v1735 = vpop.f32.mrf.mxu0
      %v1736 = vadd.f32 0.0, %v1735
      %v1737 = vpop.f32.mrf.mxu0
      %1738 = vmatprep.mubr.bf16.mxu0 0
      %1739 = vmatmul.mubr.bf16.gmra.mxu0 %v1622
      %v1740 = vpop.f32.mrf.mxu0
      %v1741 = vadd.f32 0.0, %v1740
      %v1742 = vpop.f32.mrf.mxu0
      %v1743 = vpop.f32.mrf.mxu0
      %v1744 = vadd.f32 0.0, %v1743
      %v1745 = vpop.f32.mrf.mxu0
      %1746 = vmatprep.mubr.bf16.mxu0 0
      %1747 = vmatmul.mubr.bf16.gmra.mxu0 %v1624
      %v1748 = vpop.f32.mrf.mxu0
      %v1749 = vadd.f32 0.0, %v1748
      %v1750 = vpop.f32.mrf.mxu0
      %v1751 = vpop.f32.mrf.mxu0
      %v1752 = vadd.f32 0.0, %v1751
      %v1753 = vpop.f32.mrf.mxu0
      %1754 = vmatprep.mubr.bf16.mxu0 0
      %1755 = vmatmul.mubr.bf16.gmra.mxu0 %v1626
      %v1756 = vpop.f32.mrf.mxu0
      %v1757 = vadd.f32 0.0, %v1756
      %v1758 = vpop.f32.mrf.mxu0
      %v1759 = vpop.f32.mrf.mxu0
      %v1760 = vadd.f32 0.0, %v1759
      %v1761 = vpop.f32.mrf.mxu0
      %1762 = vmatprep.mubr.bf16.mxu0 0
      %1763 = vmatmul.mubr.bf16.gmra.mxu0 %v1628
      %v1764 = vpop.f32.mrf.mxu0
      %v1765 = vadd.f32 0.0, %v1764
      %v1766 = vpop.f32.mrf.mxu0
      %v1767 = vpop.f32.mrf.mxu0
      %v1768 = vadd.f32 0.0, %v1767
      %v1769 = vpop.f32.mrf.mxu0
      %1770 = vmatprep.mubr.bf16.mxu0 0
      %1771 = vmatmul.mubr.bf16.gmra.mxu0 %v1630
      %v1772 = vpop.f32.mrf.mxu0
      %v1773 = vadd.f32 0.0, %v1772
      %v1774 = vpop.f32.mrf.mxu0
      %v1775 = vpop.f32.mrf.mxu0
      %v1776 = vadd.f32 0.0, %v1775
      %v1777 = vpop.f32.mrf.mxu0
      %1778 = vmatprep.mubr.bf16.mxu0 0
      %1779 = vmatmul.mubr.bf16.gmra.mxu0 %v1632
      %v1780 = vpop.f32.mrf.mxu0
      %v1781 = vadd.f32 0.0, %v1780
      %v1782 = vpop.f32.mrf.mxu0
      %v1783 = vpop.f32.mrf.mxu0
      %v1784 = vadd.f32 0.0, %v1783
      %v1785 = vpop.f32.mrf.mxu0
      %1786 = vmatprep.mubr.bf16.mxu0 0
      %1787 = vmatmul.mubr.bf16.gmra.mxu0 %v1634
      %v1788 = vpop.f32.mrf.mxu0
      %v1789 = vadd.f32 0.0, %v1788
      %v1790 = vpop.f32.mrf.mxu0
      %v1791 = vpop.f32.mrf.mxu0
      %v1792 = vadd.f32 0.0, %v1791
      %v1793 = vpop.f32.mrf.mxu0
      %1794 = vmatprep.mubr.bf16.mxu0 0
      %1795 = vmatmul.mubr.bf16.gmra.mxu0 %v1636
      %v1796 = vpop.f32.mrf.mxu0
      %v1797 = vadd.f32 0.0, %v1796
      %v1798 = vpop.f32.mrf.mxu0
      %v1799 = vpop.f32.mrf.mxu0
      %v1800 = vadd.f32 0.0, %v1799
      %v1801 = vpop.f32.mrf.mxu0
      %1802 = vdwg.mxu0
      %v1803 = vld [vmem:[%s2] sm:$0x1]
      %v1805 = vlaneseq
      %v1806 = vshrl.u32 %v1805, 7
      %v1807 = vsub.s32 0, %v1806
      %v1808 = vrot.slane %v1803, %v1807
      %v1810 = vmul.f32 %v1677, %v1808
      %v1811 = vmul.f32 %v1680, %v1808
      %v1812 = vmul.f32 %v1685, %v1808
      %v1813 = vmul.f32 %v1688, %v1808
      %v1814 = vmul.f32 %v1693, %v1808
      %v1815 = vmul.f32 %v1696, %v1808
      %v1816 = vmul.f32 %v1701, %v1808
      %v1817 = vmul.f32 %v1704, %v1808
      %v1818 = vmul.f32 %v1709, %v1808
      %v1819 = vmul.f32 %v1712, %v1808
      %v1820 = vmul.f32 %v1717, %v1808
      %v1821 = vmul.f32 %v1720, %v1808
      %v1822 = vmul.f32 %v1725, %v1808
      %v1823 = vmul.f32 %v1728, %v1808
      %v1824 = vmul.f32 %v1733, %v1808
      %v1825 = vmul.f32 %v1736, %v1808
      %v1826 = vmul.f32 %v1741, %v1808
      %v1827 = vmul.f32 %v1744, %v1808
      %v1828 = vmul.f32 %v1749, %v1808
      %v1829 = vmul.f32 %v1752, %v1808
      %v1830 = vmul.f32 %v1757, %v1808
      %v1831 = vmul.f32 %v1760, %v1808
      %v1832 = vmul.f32 %v1765, %v1808
      %v1833 = vmul.f32 %v1768, %v1808
      %v1834 = vmul.f32 %v1773, %v1808
      %v1835 = vmul.f32 %v1776, %v1808
      %v1836 = vmul.f32 %v1781, %v1808
      %v1837 = vmul.f32 %v1784, %v1808
      %v1838 = vmul.f32 %v1789, %v1808
      %v1839 = vmul.f32 %v1792, %v1808
      %v1840 = vmul.f32 %v1797, %v1808
      %v1841 = vmul.f32 %v1800, %v1808
      %v1842 = vld [vmem:[%s3] sm:$0x1]
      %v1844 = vlaneseq
      %v1845 = vshrl.u32 %v1844, 7
      %v1846 = vsub.s32 0, %v1845
      %v1847 = vrot.slane %v1842, %v1846
      %v1849 = vadd.f32 %v1810, %v1847
      %v1850 = vadd.f32 %v1811, %v1847
      %v1851 = vadd.f32 %v1812, %v1847
      %v1852 = vadd.f32 %v1813, %v1847
      %v1853 = vadd.f32 %v1814, %v1847
      %v1854 = vadd.f32 %v1815, %v1847
      %v1855 = vadd.f32 %v1816, %v1847
      %v1856 = vadd.f32 %v1817, %v1847
      %v1857 = vadd.f32 %v1818, %v1847
      %v1858 = vadd.f32 %v1819, %v1847
      %v1859 = vadd.f32 %v1820, %v1847
      %v1860 = vadd.f32 %v1821, %v1847
      %v1861 = vadd.f32 %v1822, %v1847
      %v1862 = vadd.f32 %v1823, %v1847
      %v1863 = vadd.f32 %v1824, %v1847
      %v1864 = vadd.f32 %v1825, %v1847
      %v1865 = vadd.f32 %v1826, %v1847
      %v1866 = vadd.f32 %v1827, %v1847
      %v1867 = vadd.f32 %v1828, %v1847
      %v1868 = vadd.f32 %v1829, %v1847
      %v1869 = vadd.f32 %v1830, %v1847
      %v1870 = vadd.f32 %v1831, %v1847
      %v1871 = vadd.f32 %v1832, %v1847
      %v1872 = vadd.f32 %v1833, %v1847
      %v1873 = vadd.f32 %v1834, %v1847
      %v1874 = vadd.f32 %v1835, %v1847
      %v1875 = vadd.f32 %v1836, %v1847
      %v1876 = vadd.f32 %v1837, %v1847
      %v1877 = vadd.f32 %v1838, %v1847
      %v1878 = vadd.f32 %v1839, %v1847
      %v1879 = vadd.f32 %v1840, %v1847
      %v1880 = vadd.f32 %v1841, %v1847
      %v1881 = vmax.f32 %v1849, 0.0
      %v1882 = vmax.f32 %v1850, 0.0
      %v1883 = vmax.f32 %v1851, 0.0
      %v1884 = vmax.f32 %v1852, 0.0
      %v1885 = vmax.f32 %v1853, 0.0
      %v1886 = vmax.f32 %v1854, 0.0
      %v1887 = vmax.f32 %v1855, 0.0
      %v1888 = vmax.f32 %v1856, 0.0
      %v1889 = vmax.f32 %v1857, 0.0
      %v1890 = vmax.f32 %v1858, 0.0
      %v1891 = vmax.f32 %v1859, 0.0
      %v1892 = vmax.f32 %v1860, 0.0
      %v1893 = vmax.f32 %v1861, 0.0
      %v1894 = vmax.f32 %v1862, 0.0
      %v1895 = vmax.f32 %v1863, 0.0
      %v1896 = vmax.f32 %v1864, 0.0
      %v1897 = vmax.f32 %v1865, 0.0
      %v1898 = vmax.f32 %v1866, 0.0
      %v1899 = vmax.f32 %v1867, 0.0
      %v1900 = vmax.f32 %v1868, 0.0
      %v1901 = vmax.f32 %v1869, 0.0
      %v1902 = vmax.f32 %v1870, 0.0
      %v1903 = vmax.f32 %v1871, 0.0
      %v1904 = vmax.f32 %v1872, 0.0
      %v1905 = vmax.f32 %v1873, 0.0
      %v1906 = vmax.f32 %v1874, 0.0
      %v1907 = vmax.f32 %v1875, 0.0
      %v1908 = vmax.f32 %v1876, 0.0
      %v1909 = vmax.f32 %v1877, 0.0
      %v1910 = vmax.f32 %v1878, 0.0
      %v1911 = vmax.f32 %v1879, 0.0
      %v1912 = vmax.f32 %v1880, 0.0
      %1913 = vst [vmem:[%s197] sm:$0xff] %v1881
      %1914 = vst [vmem:[%s197 + $0x8] sm:$0xff] %v1882
      %1915 = vst [vmem:[%s197 + $0x10] sm:$0xff] %v1883
      %1916 = vst [vmem:[%s197 + $0x18] sm:$0xff] %v1884
      %1917 = vst [vmem:[%s197 + $0x20] sm:$0xff] %v1885
      %1918 = vst [vmem:[%s197 + $0x28] sm:$0xff] %v1886
      %1919 = vst [vmem:[%s197 + $0x30] sm:$0xff] %v1887
      %1920 = vst [vmem:[%s197 + $0x38] sm:$0xff] %v1888
      %1921 = vst [vmem:[%s197 + $0x40] sm:$0xff] %v1889
      %1922 = vst [vmem:[%s197 + $0x48] sm:$0xff] %v1890
      %1923 = vst [vmem:[%s197 + $0x50] sm:$0xff] %v1891
      %1924 = vst [vmem:[%s197 + $0x58] sm:$0xff] %v1892
      %1925 = vst [vmem:[%s197 + $0x60] sm:$0xff] %v1893
      %1926 = vst [vmem:[%s197 + $0x68] sm:$0xff] %v1894
      %1927 = vst [vmem:[%s197 + $0x70] sm:$0xff] %v1895
      %1928 = vst [vmem:[%s197 + $0x78] sm:$0xff] %v1896
      %1929 = vst [vmem:[%s197 + $0x80] sm:$0xff] %v1897
      %1930 = vst [vmem:[%s197 + $0x88] sm:$0xff] %v1898
      %1931 = vst [vmem:[%s197 + $0x90] sm:$0xff] %v1899
      %1932 = vst [vmem:[%s197 + $0x98] sm:$0xff] %v1900
      %1933 = vst [vmem:[%s197 + $0xa0] sm:$0xff] %v1901
      %1934 = vst [vmem:[%s197 + $0xa8] sm:$0xff] %v1902
      %1935 = vst [vmem:[%s197 + $0xb0] sm:$0xff] %v1903
      %1936 = vst [vmem:[%s197 + $0xb8] sm:$0xff] %v1904
      %1937 = vst [vmem:[%s197 + $0xc0] sm:$0xff] %v1905
      %1938 = vst [vmem:[%s197 + $0xc8] sm:$0xff] %v1906
      %1939 = vst [vmem:[%s197 + $0xd0] sm:$0xff] %v1907
      %1940 = vst [vmem:[%s197 + $0xd8] sm:$0xff] %v1908
      %1941 = vst [vmem:[%s197 + $0xe0] sm:$0xff] %v1909
      %1942 = vst [vmem:[%s197 + $0xe8] sm:$0xff] %v1910
      %1943 = vst [vmem:[%s197 + $0xf0] sm:$0xff] %v1911
      %1944 = vst [vmem:[%s197 + $0xf8] sm:$0xff] %v1912
      %p1945 = scmp.lt.s32.totalorder %s15, 1
      %s1946 = scalar_select %p1945, %s15, 1
      %s1947 = smul.addr %s1946, 32
      %s1948 = smul.addr %s1947, 8
      %s1949 = scalar_lea.vmem %s4, %s1948
      // Predicated region
      $region37: #{conv2d_bn_relu.1} parent=35 // pred_check
        %p1950 = pneg %p122
      $region38: #{conv2d_bn_relu.1} parent=35 // pred_check_branch
        %1952 = sbr.rel (%p1950) target = $region40
      $region39: #{conv2d_bn_relu.1} parent=35 // pred_region
        _
      $region40: #{conv2d_bn_relu.1} parent=35 // pred_fallthru
        _
    $region36: #{conv2d_bn_relu.1} parent=5 // pred_fallthru
      _
    %p1953 = scmp.le.s32.totalorder 2, %s10
    // Predicated region
    $region41: #{conv2d_bn_relu.1} parent=5 // pred_check
      %p1954 = pneg %p1953
    $region42: #{conv2d_bn_relu.1} parent=5 // pred_check_branch
      %1956 = sbr.rel (%p1954) target = $region44
    $region43: #{conv2d_bn_relu.1} parent=5 // pred_region
      %s1957 = ssub.s32 %s10, 2
      // Predicated region
      $region45: #{conv2d_bn_relu.1} parent=43 // pred_check
        %p1958 = pneg %p128
      $region46: #{conv2d_bn_relu.1} parent=43 // pred_check_branch
        %1960 = sbr.rel (%p1958) target = $region48
      $region47: #{conv2d_bn_relu.1} parent=43 // pred_region
        %p1961 = scmp.lt.s32.totalorder %s16, 1
        %s1962 = scalar_select %p1961, %s16, 1
        %s1963 = smul.addr %s1962, 32
        %s1964 = smul.addr %s1963, 8
        %s1965 = scalar_lea.vmem %s4, %s1964
      $region48: #{conv2d_bn_relu.1} parent=43 // pred_fallthru
        _
    $region44: #{conv2d_bn_relu.1} parent=5 // pred_fallthru
      _
  $region6: #{conv2d_bn_relu.1} parent=0 // loop_footer
    %s14 = sadd.s32 1, %s10
  $region7: #{conv2d_bn_relu.1} parent=0 // loop_footer_branch
    %9 = sbr.rel target = $region3
  $region8: #{conv2d_bn_relu.1} parent=0 // loop_exit
    _

</llo_original>
